<compile_context>
chip_gen: v5e
topology: v5e:2x2
jax: 0.10.0
libtpu: 0.0.40
codegen_flags: <defaults>
</compile_context>

<pallas_src>
import math

import jax
import jax.numpy as jnp
from jax.experimental import pallas as pl
from jax.experimental.pallas import tpu as pltpu

PATCH = 8
EMBED_DIM = 32
NUM_HEADS = 4
DEPTH = 2
MLP_RATIO = 4
LORA_R = 4
LORA_ALPHA = 4
LORA_SCALE = LORA_ALPHA / LORA_R
LN_EPS = 1e-6

# Matmul operand dtype (weights + activations at the matmul boundary).
# bf16 is the MXU fast path on v5e/v6e/v7x and halves weight DMA / VMEM
# residency; accumulation stays f32 (preferred_element_type).
MATMUL_DTYPE = jnp.bfloat16

PER_LAYER_KEYS = (
    "ln1_g", "ln1_b", "wqkv", "bqkv", "wproj", "bproj",
    "ln2_g", "ln2_b", "wfc1", "bfc1", "wfc2", "bfc2",
)

_GELU_C = math.sqrt(2.0 / math.pi)


def _mm(x, w):
    return jnp.dot(x.astype(MATMUL_DTYPE), w.astype(MATMUL_DTYPE),
                   preferred_element_type=jnp.float32)


def _layernorm(x, g, b):
    mu = jnp.mean(x, axis=-1, keepdims=True)
    var = jnp.mean((x - mu) ** 2, axis=-1, keepdims=True)
    return (x - mu) * jax.lax.rsqrt(var + LN_EPS) * g + b


def _gelu(x):
    # tanh-approximate GELU: runs on the EUP slot, freeing VALU bandwidth.
    # TODO(synk): switch back to exact erf GELU if bit-parity with nn.GELU()
    # is required.
    return 0.5 * x * (1.0 + jnp.tanh(_GELU_C * (x + 0.044715 * x * x * x)))


# ----------------------------- prepare_tokens --------------------------------
def prepare_tokens_kernel(patches_ref, pw_ref, prep_ref, o_ref):
    # One image per grid step: tokens = im2col-patches @ W_patch + (cls|bias)+pos.
    # The cls row in `patches` is zero, so it contributes nothing to the matmul
    # and `prep` carries (cls_token + pos[0]) there.
    o_ref[...] = _mm(patches_ref[...], pw_ref[...]) + prep_ref[...]


def prepare_tokens(patches, pw, prep, *, B, N, D):
    K = patches.shape[-1]
    return pl.pallas_call(
        prepare_tokens_kernel,
        out_shape=jax.ShapeDtypeStruct((B, N, D), jnp.float32),
        grid=(B,),
        in_specs=[
            pl.BlockSpec((None, N, K), lambda b: (b, 0, 0)),
            pl.BlockSpec((K, D), lambda b: (0, 0)),
            pl.BlockSpec((N, D), lambda b: (0, 0)),
        ],
        out_specs=pl.BlockSpec((None, N, D), lambda b: (b, 0, 0)),
        compiler_params=pltpu.CompilerParams(
            dimension_semantics=("parallel",)),
    )(patches, pw, prep)


# -------------------------- fused transformer stack ---------------------------
def make_layer_kernel(N, D, num_heads):
    hd = D // num_heads

    def kernel(tok_ref,
               g1_ref, b1_ref, wqkv_ref, bqkv_ref, wproj_ref, bproj_ref,
               g2_ref, b2_ref, wfc1_ref, bfc1_ref, wfc2_ref, bfc2_ref,
               o_ref):
        layer = pl.program_id(1)

        # Initialize the resident activation block from the prepared tokens
        # (aliased with the output buffer in HBM) once, at the first layer.
        @pl.when(layer == 0)
        def _init():
            o_ref[...] = tok_ref[...]

        x = o_ref[...]                                        # (N, D) f32

        # ------------------ attention (per image, no mask) -------------------
        h = _layernorm(x, g1_ref[...], b1_ref[...])
        # 1/sqrt(hd) is already folded into the q columns of wqkv / bqkv.
        qkv = _mm(h, wqkv_ref[...]) + bqkv_ref[...]           # (N, 3D)

        wproj = wproj_ref[...]
        attn_out = jnp.zeros_like(x)
        for i in range(num_heads):                            # static unroll
            qh = qkv[:, i * hd:(i + 1) * hd]                  # (N, hd)
            kh = qkv[:, D + i * hd:D + (i + 1) * hd]
            vh = qkv[:, 2 * D + i * hd:2 * D + (i + 1) * hd]
            s = jax.lax.dot_general(                          # q @ k^T, (N, N)
                qh.astype(MATMUL_DTYPE), kh.astype(MATMUL_DTYPE),
                (((1,), (1,)), ((), ())),
                preferred_element_type=jnp.float32)
            s = s - jnp.max(s, axis=-1, keepdims=True)
            p = jnp.exp(s)
            p = p * pl.reciprocal(jnp.sum(p, axis=-1, keepdims=True),
                                  approx=True)
            ctx = jnp.dot(p.astype(MATMUL_DTYPE), vh.astype(MATMUL_DTYPE),
                          preferred_element_type=jnp.float32)  # (N, hd)
            # MXU-accumulated projection against the per-head sublane slice of
            # wproj: no head concatenate / stack / reshape relayout.
            attn_out = attn_out + jnp.dot(
                ctx.astype(MATMUL_DTYPE),
                wproj[i * hd:(i + 1) * hd, :].astype(MATMUL_DTYPE),
                preferred_element_type=jnp.float32)
        x = x + attn_out + bproj_ref[...]

        # -------------------------------- MLP --------------------------------
        # TODO(synk): at real DINO sizes (D=768, hidden=3072) K-tile wfc1/wfc2
        # with an inner pltpu.emit_pipeline (and consider fp8 weights on v7x)
        # so only a slab of each fc weight is VMEM-resident at a time.
        h = _layernorm(x, g2_ref[...], b2_ref[...])
        h = _mm(h, wfc1_ref[...]) + bfc1_ref[...]
        h = _gelu(h)
        h = _mm(h, wfc2_ref[...]) + bfc2_ref[...]

        # NOTE: at D=768 (multiple of 128) this store is an unmasked full-lane
        # vst; at the demo D=32 it is masked but still a single full block.
        o_ref[...] = x + h

    return kernel


def fused_layers(tokens, layer_weights, *, B, N, D):
    def wspec(w):
        # stacked (DEPTH, r, c) weight, streamed by layer id (squeezed lead dim)
        return pl.BlockSpec((None,) + w.shape[1:], lambda b, l: (l, 0, 0))

    tok_in_spec = pl.BlockSpec((None, N, D), lambda b, l: (b, 0, 0))
    tok_out_spec = pl.BlockSpec((None, N, D), lambda b, l: (b, 0, 0))

    # TODO(synk): when N*D per image grows beyond one VMEM block, tile the
    # token axis with a (tq, D) out_spec (tq multiple of 8, D multiple of 128).
    return pl.pallas_call(
        make_layer_kernel(N, D, NUM_HEADS),
        out_shape=jax.ShapeDtypeStruct((B, N, D), jnp.float32),
        grid=(B, DEPTH),
        in_specs=[tok_in_spec] + [wspec(w) for w in layer_weights],
        out_specs=tok_out_spec,
        input_output_aliases={0: 0},          # tokens updated in place
        compiler_params=pltpu.CompilerParams(
            # batch axis parallel (v7x 2nd TC), layer axis is a sequential carry
            dimension_semantics=("parallel", "arbitrary"),
            vmem_limit_bytes=32 * 1024 * 1024,
        ),
    )(tokens, *layer_weights)


# ---------------------------------- params -----------------------------------
def init_params(key, in_chans, D, depth, num_patches, r):
    hdn = MLP_RATIO * D

    def normal(k, shape, std=0.02):
        return jax.random.normal(k, shape, dtype=jnp.float32) * std

    keys = iter(jax.random.split(key, 4 + depth * 8))
    params = {
        "patch_w": normal(next(keys), (D, in_chans, PATCH, PATCH)),
        "patch_b": jnp.zeros((D,), jnp.float32),
        "cls_token": normal(next(keys), (1, 1, D)),
        "pos_embed": normal(next(keys), (1, num_patches + 1, D)),
        "blocks": [],
    }
    for _ in range(depth):
        blk = {
            "ln1_g": jnp.ones((1, D), jnp.float32),
            "ln1_b": jnp.zeros((1, D), jnp.float32),
            # weights stored as (in, out)
            "wqkv": normal(next(keys), (D, 3 * D)),
            "bqkv": jnp.zeros((1, 3 * D), jnp.float32),
            "aqkv": normal(next(keys), (D, r), std=0.1),
            "bbqkv": jnp.zeros((r, 3 * D), jnp.float32),   # PEFT: lora_B init = 0
            "wproj": normal(next(keys), (D, D)),
            "bproj": jnp.zeros((1, D), jnp.float32),
            "aproj": normal(next(keys), (D, r), std=0.1),
            "bbproj": jnp.zeros((r, D), jnp.float32),
            "ln2_g": jnp.ones((1, D), jnp.float32),
            "ln2_b": jnp.zeros((1, D), jnp.float32),
            "wfc1": normal(next(keys), (D, hdn)),
            "bfc1": jnp.zeros((1, hdn), jnp.float32),
            "afc1": normal(next(keys), (D, r), std=0.1),
            "bbfc1": jnp.zeros((r, hdn), jnp.float32),
            "wfc2": normal(next(keys), (hdn, D)),
            "bfc2": jnp.zeros((1, D), jnp.float32),
            "afc2": normal(next(keys), (hdn, r), std=0.1),
            "bbfc2": jnp.zeros((r, D), jnp.float32),
        }
        params["blocks"].append(blk)
    return params


def pack_params(params):
    """Fold LoRA into the base weights (numerically equivalent), fold the
    attention scale into the q columns of w_qkv/b_qkv, cast matmul weights to
    bf16 and stack per-layer weights to (DEPTH, ...) for layer streaming."""
    D = EMBED_DIM
    hd = D // NUM_HEADS
    scale = 1.0 / math.sqrt(hd)
    blocks = params["blocks"]

    def fold(w, a, bb):
        # TODO(synk): if the LoRA matmuls must physically execute (not just be
        # numerically equivalent), keep them in-kernel instead of folding here.
        return w + LORA_SCALE * (a @ bb)

    def stack(fn):
        return jnp.stack([fn(b) for b in blocks])

    def qkv_w(b):
        w = fold(b["wqkv"], b["aqkv"], b["bbqkv"])
        return w.at[:, :D].multiply(scale).astype(MATMUL_DTYPE)

    def qkv_b(b):
        return b["bqkv"].at[:, :D].multiply(scale)

    return {
        "patch_wmat": params["patch_w"].reshape(D, -1).T.astype(MATMUL_DTYPE),  # (K, D)
        "patch_b": params["patch_b"].reshape(1, D),
        "cls": params["cls_token"].reshape(1, D),
        "pos": params["pos_embed"],                                             # (1, N, D)
        "ln1_g": stack(lambda b: b["ln1_g"]),
        "ln1_b": stack(lambda b: b["ln1_b"]),
        "wqkv": stack(qkv_w),
        "bqkv": stack(qkv_b),
        "wproj": stack(lambda b: fold(b["wproj"], b["aproj"], b["bbproj"])
                       .astype(MATMUL_DTYPE)),
        "bproj": stack(lambda b: b["bproj"]),
        "ln2_g": stack(lambda b: b["ln2_g"]),
        "ln2_b": stack(lambda b: b["ln2_b"]),
        "wfc1": stack(lambda b: fold(b["wfc1"], b["afc1"], b["bbfc1"])
                      .astype(MATMUL_DTYPE)),
        "bfc1": stack(lambda b: b["bfc1"]),
        "wfc2": stack(lambda b: fold(b["wfc2"], b["afc2"], b["bbfc2"])
                      .astype(MATMUL_DTYPE)),
        "bfc2": stack(lambda b: b["bfc2"]),
    }


# ---------------------------------- forward ----------------------------------
@jax.jit
def dino_peft_forward(x, packed):
    B, C, H, W = x.shape
    D = EMBED_DIM
    hp, wp = H // PATCH, W // PATCH
    Np = hp * wp
    N = Np + 1
    K = C * PATCH * PATCH

    # im2col for the stride-8 patch conv; insert a zero "cls" row per image so
    # prepare_tokens is a single dense matmul (zero row @ W == 0).
    patches = x.reshape(B, C, hp, PATCH, wp, PATCH)
    patches = patches.transpose(0, 2, 4, 1, 3, 5).reshape(B, Np, K)
    patches = jnp.pad(patches, ((0, 0), (1, 0), (0, 0)))          # (B, N, K)

    # row-wise additive term: cls_token + pos[0] at the cls row, conv bias +
    # pos[1:] at patch rows (image-independent, so shape (N, D)).
    pos = packed["pos"][0]                                        # (N, D)
    prep = jnp.concatenate([packed["cls"] + pos[:1],
                            packed["patch_b"] + pos[1:]], axis=0)  # (N, D)

    tokens = prepare_tokens(patches, packed["patch_wmat"], prep,
                            B=B, N=N, D=D)                        # (B, N, D)

    layer_weights = tuple(packed[k] for k in PER_LAYER_KEYS)
    tokens = fused_layers(tokens, layer_weights, B=B, N=N, D=D)   # (B, N, D)

    # rearrange(x[:, 1:], 'b (h w) c -> b c h w'); kept in XLA because the
    # NCHW transpose would make in-kernel stores lane-sparse (minor dim = wp).
    return tokens[:, 1:].reshape(B, hp, wp, D).transpose(0, 3, 1, 2)


if __name__ == "__main__":
    key = jax.random.PRNGKey(0)
    kx, kp = jax.random.split(key)

    B, C, H, W = 2, 3, 16, 16          # -> 2x2 patches, 5 tokens per image
    x = jax.random.normal(kx, (B, C, H, W), dtype=jnp.float32)
    params = init_params(kp, in_chans=C, D=EMBED_DIM, depth=DEPTH,
                         num_patches=(H // PATCH) * (W // PATCH), r=LORA_R)
    packed = pack_params(params)

    out = dino_peft_forward(x, packed)
    out = jax.block_until_ready(out)
    assert out.shape == (B, EMBED_DIM, H // PATCH, W // PATCH), out.shape
    assert bool(jnp.all(jnp.isfinite(out))), "non-finite output"
    print("KERNEL_OK")
</pallas_src>

<mosaic_0001>
module attributes {stable_mosaic.version = 11 : i64} {
  func.func @prepare_tokens_kernel(%arg0: i32, %arg1: memref<1x5x192xf32, #tpu.memory_space<vmem>>, %arg2: memref<192x32xbf16, #tpu.memory_space<vmem>>, %arg3: memref<5x32xf32, #tpu.memory_space<vmem>>, %arg4: memref<1x5x32xf32, #tpu.memory_space<vmem>>) attributes {dimension_semantics = [#tpu.dimension_semantics<parallel>], iteration_bounds = array<i64: 2>, scalar_prefetch = 0 : i64, scratch_operands = 0 : i64, tpu.core_type = #tpu.core_type<tc>, window_params = [{transform_indices = @transform_0, window_bounds = array<i64: 1, 5, 192>}, {pipeline_mode = #tpu.pipeline_mode<synchronous>, transform_indices = @transform_1, window_bounds = array<i64: 192, 32>}, {pipeline_mode = #tpu.pipeline_mode<synchronous>, transform_indices = @transform_2, window_bounds = array<i64: 5, 32>}, {transform_indices = @transform_3, window_bounds = array<i64: 1, 5, 32>}]} {
    %c0 = arith.constant 0 : index
    %c0_0 = arith.constant 0 : index
    %c0_1 = arith.constant 0 : index
    %0 = vector.load %arg1[%c0, %c0_0, %c0_1] : memref<1x5x192xf32, #tpu.memory_space<vmem>>, vector<1x5x192xf32>
    %1 = vector.shape_cast %0 : vector<1x5x192xf32> to vector<5x192xf32>
    %c0_2 = arith.constant 0 : index
    %c0_3 = arith.constant 0 : index
    %2 = vector.load %arg2[%c0_2, %c0_3] : memref<192x32xbf16, #tpu.memory_space<vmem>>, vector<192x32xbf16>
    %3 = arith.truncf %1 : vector<5x192xf32> to vector<5x192xbf16>
    %cst = arith.constant dense<0.000000e+00> : vector<5x32xf32>
    %4 = tpu.matmul %3, %2, %cst {dimension_numbers = #tpu.dot_dimension_numbers<[1], [0], [0], [1], [0, 0, 1, 1], [], []>} : vector<5x192xbf16>, vector<192x32xbf16>, vector<5x32xf32> -> vector<5x32xf32>
    %c0_4 = arith.constant 0 : index
    %c0_5 = arith.constant 0 : index
    %5 = vector.load %arg3[%c0_4, %c0_5] : memref<5x32xf32, #tpu.memory_space<vmem>>, vector<5x32xf32>
    %6 = arith.addf %4, %5 : vector<5x32xf32>
    %c0_6 = arith.constant 0 : index
    %c0_7 = arith.constant 0 : index
    %c0_8 = arith.constant 0 : index
    %7 = vector.load %arg4[%c0_6, %c0_7, %c0_8] : memref<1x5x32xf32, #tpu.memory_space<vmem>>, vector<1x5x32xf32>
    %8 = vector.shape_cast %7 : vector<1x5x32xf32> to vector<5x32xf32>
    %9 = vector.shape_cast %6 : vector<5x32xf32> to vector<1x5x32xf32>
    tpu.vector_store %arg4[%c0_6, %c0_7, %c0_8], %9 {strides = array<i32>} : memref<1x5x32xf32, #tpu.memory_space<vmem>>, vector<1x5x32xf32>,
    return
  }
  func.func @transform_0(%arg0: i32) -> (i32, i32, i32) {
    %c0_i32 = arith.constant 0 : i32
    %c0_i32_0 = arith.constant 0 : i32
    %c0_i32_1 = arith.constant 0 : i32
    return %arg0, %c0_i32, %c0_i32_0 : i32, i32, i32
  }
  func.func @transform_1(%arg0: i32) -> (i32, i32) {
    %c0_i32 = arith.constant 0 : i32
    %c0_i32_0 = arith.constant 0 : i32
    %c0_i32_1 = arith.constant 0 : i32
    return %c0_i32, %c0_i32_0 : i32, i32
  }
  func.func @transform_2(%arg0: i32) -> (i32, i32) {
    %c0_i32 = arith.constant 0 : i32
    %c0_i32_0 = arith.constant 0 : i32
    %c0_i32_1 = arith.constant 0 : i32
    return %c0_i32, %c0_i32_0 : i32, i32
  }
  func.func @transform_3(%arg0: i32) -> (i32, i32, i32) {
    %c0_i32 = arith.constant 0 : i32
    %c0_i32_0 = arith.constant 0 : i32
    %c0_i32_1 = arith.constant 0 : i32
    return %arg0, %c0_i32, %c0_i32_0 : i32, i32, i32
  }
}

module attributes {stable_mosaic.version = 11 : i64} {
  func.func @kernel(%arg0: i32, %arg1: i32, %arg2: memref<1x5x32xf32, #tpu.memory_space<vmem>>, %arg3: memref<1x1x32xf32, #tpu.memory_space<vmem>>, %arg4: memref<1x1x32xf32, #tpu.memory_space<vmem>>, %arg5: memref<1x32x96xbf16, #tpu.memory_space<vmem>>, %arg6: memref<1x1x96xf32, #tpu.memory_space<vmem>>, %arg7: memref<1x32x32xbf16, #tpu.memory_space<vmem>>, %arg8: memref<1x1x32xf32, #tpu.memory_space<vmem>>, %arg9: memref<1x1x32xf32, #tpu.memory_space<vmem>>, %arg10: memref<1x1x32xf32, #tpu.memory_space<vmem>>, %arg11: memref<1x32x128xbf16, #tpu.memory_space<vmem>>, %arg12: memref<1x1x128xf32, #tpu.memory_space<vmem>>, %arg13: memref<1x128x32xbf16, #tpu.memory_space<vmem>>, %arg14: memref<1x1x32xf32, #tpu.memory_space<vmem>>, %arg15: memref<1x5x32xf32, #tpu.memory_space<vmem>>) attributes {dimension_semantics = [#tpu.dimension_semantics<parallel>, #tpu.dimension_semantics<arbitrary>], iteration_bounds = array<i64: 2, 2>, scalar_prefetch = 0 : i64, scratch_operands = 0 : i64, tpu.core_type = #tpu.core_type<tc>, window_params = [{transform_indices = @transform_0, window_bounds = array<i64: 1, 5, 32>}, {transform_indices = @transform_1, window_bounds = array<i64: 1, 1, 32>}, {transform_indices = @transform_2, window_bounds = array<i64: 1, 1, 32>}, {transform_indices = @transform_3, window_bounds = array<i64: 1, 32, 96>}, {transform_indices = @transform_4, window_bounds = array<i64: 1, 1, 96>}, {transform_indices = @transform_5, window_bounds = array<i64: 1, 32, 32>}, {transform_indices = @transform_6, window_bounds = array<i64: 1, 1, 32>}, {transform_indices = @transform_7, window_bounds = array<i64: 1, 1, 32>}, {transform_indices = @transform_8, window_bounds = array<i64: 1, 1, 32>}, {transform_indices = @transform_9, window_bounds = array<i64: 1, 32, 128>}, {transform_indices = @transform_10, window_bounds = array<i64: 1, 1, 128>}, {transform_indices = @transform_11, window_bounds = array<i64: 1, 128, 32>}, {transform_indices = @transform_12, window_bounds = array<i64: 1, 1, 32>}, {transform_indices = @transform_13, window_bounds = array<i64: 1, 5, 32>}]} {
    %c0_i32 = arith.constant 0 : i32
    %0 = arith.cmpi eq, %arg1, %c0_i32 : i32
    %1 = arith.extui %0 : i1 to i32
    %c0_i32_0 = arith.constant 0 : i32
    %2 = arith.cmpi ne, %1, %c0_i32_0 : i32
    scf.if %2 {
      %c0_79 = arith.constant 0 : index
      %c0_80 = arith.constant 0 : index
      %c0_81 = arith.constant 0 : index
      %198 = vector.load %arg2[%c0_79, %c0_80, %c0_81] : memref<1x5x32xf32, #tpu.memory_space<vmem>>, vector<1x5x32xf32>
      %199 = vector.shape_cast %198 : vector<1x5x32xf32> to vector<5x32xf32>
      %c0_82 = arith.constant 0 : index
      %c0_83 = arith.constant 0 : index
      %c0_84 = arith.constant 0 : index
      %200 = vector.load %arg15[%c0_82, %c0_83, %c0_84] : memref<1x5x32xf32, #tpu.memory_space<vmem>>, vector<1x5x32xf32>
      %201 = vector.shape_cast %200 : vector<1x5x32xf32> to vector<5x32xf32>
      %202 = vector.shape_cast %199 : vector<5x32xf32> to vector<1x5x32xf32>
      tpu.vector_store %arg15[%c0_82, %c0_83, %c0_84], %202 {strides = array<i32>} : memref<1x5x32xf32, #tpu.memory_space<vmem>>, vector<1x5x32xf32>,
    } else {
    }
    %c0 = arith.constant 0 : index
    %c0_1 = arith.constant 0 : index
    %c0_2 = arith.constant 0 : index
    %3 = vector.load %arg15[%c0, %c0_1, %c0_2] : memref<1x5x32xf32, #tpu.memory_space<vmem>>, vector<1x5x32xf32>
    %4 = vector.shape_cast %3 : vector<1x5x32xf32> to vector<5x32xf32>
    %c0_3 = arith.constant 0 : index
    %c0_4 = arith.constant 0 : index
    %c0_5 = arith.constant 0 : index
    %5 = vector.load %arg3[%c0_3, %c0_4, %c0_5] : memref<1x1x32xf32, #tpu.memory_space<vmem>>, vector<1x1x32xf32>
    %6 = vector.shape_cast %5 : vector<1x1x32xf32> to vector<1x32xf32>
    %c0_6 = arith.constant 0 : index
    %c0_7 = arith.constant 0 : index
    %c0_8 = arith.constant 0 : index
    %7 = vector.load %arg4[%c0_6, %c0_7, %c0_8] : memref<1x1x32xf32, #tpu.memory_space<vmem>>, vector<1x1x32xf32>
    %8 = vector.shape_cast %7 : vector<1x1x32xf32> to vector<1x32xf32>
    %cst = arith.constant dense<0.000000e+00> : vector<5xf32>
    %9 = vector.multi_reduction <add>, %4, %cst [1] : vector<5x32xf32> to vector<5xf32>
    %10 = vector.shape_cast %9 : vector<5xf32> to vector<5x1xf32>
    %cst_9 = arith.constant 3.200000e+01 : f32
    %11 = vector.broadcast %cst_9 : f32 to vector<5x1xf32>
    %12 = arith.divf %10, %11 : vector<5x1xf32>
    %13 = vector.broadcast %12 : vector<5x1xf32> to vector<5x32xf32>
    %14 = arith.subf %4, %13 : vector<5x32xf32>
    %15 = arith.mulf %14, %14 : vector<5x32xf32>
    %cst_10 = arith.constant dense<0.000000e+00> : vector<5xf32>
    %16 = vector.multi_reduction <add>, %15, %cst_10 [1] : vector<5x32xf32> to vector<5xf32>
    %17 = vector.shape_cast %16 : vector<5xf32> to vector<5x1xf32>
    %cst_11 = arith.constant 3.200000e+01 : f32
    %18 = vector.broadcast %cst_11 : f32 to vector<5x1xf32>
    %19 = arith.divf %17, %18 : vector<5x1xf32>
    %20 = vector.broadcast %12 : vector<5x1xf32> to vector<5x32xf32>
    %21 = arith.subf %4, %20 : vector<5x32xf32>
    %cst_12 = arith.constant 9.99999997E-7 : f32
    %22 = vector.broadcast %cst_12 : f32 to vector<5x1xf32>
    %23 = arith.addf %19, %22 : vector<5x1xf32>
    %24 = math.rsqrt %23 : vector<5x1xf32>
    %25 = vector.broadcast %24 : vector<5x1xf32> to vector<5x32xf32>
    %26 = arith.mulf %21, %25 : vector<5x32xf32>
    %27 = vector.broadcast %6 : vector<1x32xf32> to vector<5x32xf32>
    %28 = arith.mulf %26, %27 : vector<5x32xf32>
    %29 = vector.broadcast %8 : vector<1x32xf32> to vector<5x32xf32>
    %30 = arith.addf %28, %29 : vector<5x32xf32>
    %c0_13 = arith.constant 0 : index
    %c0_14 = arith.constant 0 : index
    %c0_15 = arith.constant 0 : index
    %31 = vector.load %arg5[%c0_13, %c0_14, %c0_15] : memref<1x32x96xbf16, #tpu.memory_space<vmem>>, vector<1x32x96xbf16>
    %32 = vector.shape_cast %31 : vector<1x32x96xbf16> to vector<32x96xbf16>
    %33 = arith.truncf %30 : vector<5x32xf32> to vector<5x32xbf16>
    %cst_16 = arith.constant dense<0.000000e+00> : vector<5x96xf32>
    %34 = tpu.matmul %33, %32, %cst_16 {dimension_numbers = #tpu.dot_dimension_numbers<[1], [0], [0], [1], [0, 0, 1, 1], [], []>} : vector<5x32xbf16>, vector<32x96xbf16>, vector<5x96xf32> -> vector<5x96xf32>
    %c0_17 = arith.constant 0 : index
    %c0_18 = arith.constant 0 : index
    %c0_19 = arith.constant 0 : index
    %35 = vector.load %arg6[%c0_17, %c0_18, %c0_19] : memref<1x1x96xf32, #tpu.memory_space<vmem>>, vector<1x1x96xf32>
    %36 = vector.shape_cast %35 : vector<1x1x96xf32> to vector<1x96xf32>
    %37 = vector.broadcast %36 : vector<1x96xf32> to vector<5x96xf32>
    %38 = arith.addf %34, %37 : vector<5x96xf32>
    %c0_20 = arith.constant 0 : index
    %c0_21 = arith.constant 0 : index
    %c0_22 = arith.constant 0 : index
    %39 = vector.load %arg7[%c0_20, %c0_21, %c0_22] : memref<1x32x32xbf16, #tpu.memory_space<vmem>>, vector<1x32x32xbf16>
    %40 = vector.shape_cast %39 : vector<1x32x32xbf16> to vector<32x32xbf16>
    %cst_23 = arith.constant 0.000000e+00 : f32
    %41 = vector.broadcast %cst_23 : f32 to vector<5x32xf32>
    %42 = vector.extract_strided_slice %38 {offsets = [0, 0], sizes = [5, 8], strides = [1, 1]} : vector<5x96xf32> to vector<5x8xf32>
    %43 = vector.extract_strided_slice %38 {offsets = [0, 32], sizes = [5, 8], strides = [1, 1]} : vector<5x96xf32> to vector<5x8xf32>
    %44 = vector.extract_strided_slice %38 {offsets = [0, 64], sizes = [5, 8], strides = [1, 1]} : vector<5x96xf32> to vector<5x8xf32>
    %45 = arith.truncf %42 : vector<5x8xf32> to vector<5x8xbf16>
    %46 = arith.truncf %43 : vector<5x8xf32> to vector<5x8xbf16>
    %cst_24 = arith.constant dense<0.000000e+00> : vector<5x5xf32>
    %47 = tpu.matmul %45, %46, %cst_24 {dimension_numbers = #tpu.dot_dimension_numbers<[1], [1], [0], [0], [0, 0, 1, 0], [], []>} : vector<5x8xbf16>, vector<5x8xbf16>, vector<5x5xf32> -> vector<5x5xf32>
    %cst_25 = arith.constant dense<0xFF800000> : vector<5xf32>
    %48 = vector.multi_reduction <maximumf>, %47, %cst_25 [1] : vector<5x5xf32> to vector<5xf32>
    %49 = vector.shape_cast %48 : vector<5xf32> to vector<5x1xf32>
    %50 = vector.broadcast %49 : vector<5x1xf32> to vector<5x5xf32>
    %51 = arith.subf %47, %50 : vector<5x5xf32>
    %52 = math.exp %51 : vector<5x5xf32>
    %cst_26 = arith.constant dense<0.000000e+00> : vector<5xf32>
    %53 = vector.multi_reduction <add>, %52, %cst_26 [1] : vector<5x5xf32> to vector<5xf32>
    %54 = vector.shape_cast %53 : vector<5xf32> to vector<5x1xf32>
    %55 = tpu.reciprocal %54 {approx = true} : vector<5x1xf32> -> vector<5x1xf32>
    %56 = vector.broadcast %55 : vector<5x1xf32> to vector<5x5xf32>
    %57 = arith.mulf %52, %56 : vector<5x5xf32>
    %58 = arith.truncf %57 : vector<5x5xf32> to vector<5x5xbf16>
    %59 = arith.truncf %44 : vector<5x8xf32> to vector<5x8xbf16>
    %cst_27 = arith.constant dense<0.000000e+00> : vector<5x8xf32>
    %60 = tpu.matmul %58, %59, %cst_27 {dimension_numbers = #tpu.dot_dimension_numbers<[1], [0], [0], [1], [0, 0, 1, 1], [], []>} : vector<5x5xbf16>, vector<5x8xbf16>, vector<5x8xf32> -> vector<5x8xf32>
    %61 = arith.truncf %60 : vector<5x8xf32> to vector<5x8xbf16>
    %62 = vector.extract_strided_slice %40 {offsets = [0, 0], sizes = [8, 32], strides = [1, 1]} : vector<32x32xbf16> to vector<8x32xbf16>
    %cst_28 = arith.constant dense<0.000000e+00> : vector<5x32xf32>
    %63 = tpu.matmul %61, %62, %cst_28 {dimension_numbers = #tpu.dot_dimension_numbers<[1], [0], [0], [1], [0, 0, 1, 1], [], []>} : vector<5x8xbf16>, vector<8x32xbf16>, vector<5x32xf32> -> vector<5x32xf32>
    %64 = arith.addf %41, %63 : vector<5x32xf32>
    %65 = vector.extract_strided_slice %38 {offsets = [0, 8], sizes = [5, 8], strides = [1, 1]} : vector<5x96xf32> to vector<5x8xf32>
    %66 = vector.extract_strided_slice %38 {offsets = [0, 40], sizes = [5, 8], strides = [1, 1]} : vector<5x96xf32> to vector<5x8xf32>
    %67 = vector.extract_strided_slice %38 {offsets = [0, 72], sizes = [5, 8], strides = [1, 1]} : vector<5x96xf32> to vector<5x8xf32>
    %68 = arith.truncf %65 : vector<5x8xf32> to vector<5x8xbf16>
    %69 = arith.truncf %66 : vector<5x8xf32> to vector<5x8xbf16>
    %cst_29 = arith.constant dense<0.000000e+00> : vector<5x5xf32>
    %70 = tpu.matmul %68, %69, %cst_29 {dimension_numbers = #tpu.dot_dimension_numbers<[1], [1], [0], [0], [0, 0, 1, 0], [], []>} : vector<5x8xbf16>, vector<5x8xbf16>, vector<5x5xf32> -> vector<5x5xf32>
    %cst_30 = arith.constant dense<0xFF800000> : vector<5xf32>
    %71 = vector.multi_reduction <maximumf>, %70, %cst_30 [1] : vector<5x5xf32> to vector<5xf32>
    %72 = vector.shape_cast %71 : vector<5xf32> to vector<5x1xf32>
    %73 = vector.broadcast %72 : vector<5x1xf32> to vector<5x5xf32>
    %74 = arith.subf %70, %73 : vector<5x5xf32>
    %75 = math.exp %74 : vector<5x5xf32>
    %cst_31 = arith.constant dense<0.000000e+00> : vector<5xf32>
    %76 = vector.multi_reduction <add>, %75, %cst_31 [1] : vector<5x5xf32> to vector<5xf32>
    %77 = vector.shape_cast %76 : vector<5xf32> to vector<5x1xf32>
    %78 = tpu.reciprocal %77 {approx = true} : vector<5x1xf32> -> vector<5x1xf32>
    %79 = vector.broadcast %78 : vector<5x1xf32> to vector<5x5xf32>
    %80 = arith.mulf %75, %79 : vector<5x5xf32>
    %81 = arith.truncf %80 : vector<5x5xf32> to vector<5x5xbf16>
    %82 = arith.truncf %67 : vector<5x8xf32> to vector<5x8xbf16>
    %cst_32 = arith.constant dense<0.000000e+00> : vector<5x8xf32>
    %83 = tpu.matmul %81, %82, %cst_32 {dimension_numbers = #tpu.dot_dimension_numbers<[1], [0], [0], [1], [0, 0, 1, 1], [], []>} : vector<5x5xbf16>, vector<5x8xbf16>, vector<5x8xf32> -> vector<5x8xf32>
    %84 = arith.truncf %83 : vector<5x8xf32> to vector<5x8xbf16>
    %85 = vector.extract_strided_slice %40 {offsets = [8, 0], sizes = [8, 32], strides = [1, 1]} : vector<32x32xbf16> to vector<8x32xbf16>
    %cst_33 = arith.constant dense<0.000000e+00> : vector<5x32xf32>
    %86 = tpu.matmul %84, %85, %cst_33 {dimension_numbers = #tpu.dot_dimension_numbers<[1], [0], [0], [1], [0, 0, 1, 1], [], []>} : vector<5x8xbf16>, vector<8x32xbf16>, vector<5x32xf32> -> vector<5x32xf32>
    %87 = arith.addf %64, %86 : vector<5x32xf32>
    %88 = vector.extract_strided_slice %38 {offsets = [0, 16], sizes = [5, 8], strides = [1, 1]} : vector<5x96xf32> to vector<5x8xf32>
    %89 = vector.extract_strided_slice %38 {offsets = [0, 48], sizes = [5, 8], strides = [1, 1]} : vector<5x96xf32> to vector<5x8xf32>
    %90 = vector.extract_strided_slice %38 {offsets = [0, 80], sizes = [5, 8], strides = [1, 1]} : vector<5x96xf32> to vector<5x8xf32>
    %91 = arith.truncf %88 : vector<5x8xf32> to vector<5x8xbf16>
    %92 = arith.truncf %89 : vector<5x8xf32> to vector<5x8xbf16>
    %cst_34 = arith.constant dense<0.000000e+00> : vector<5x5xf32>
    %93 = tpu.matmul %91, %92, %cst_34 {dimension_numbers = #tpu.dot_dimension_numbers<[1], [1], [0], [0], [0, 0, 1, 0], [], []>} : vector<5x8xbf16>, vector<5x8xbf16>, vector<5x5xf32> -> vector<5x5xf32>
    %cst_35 = arith.constant dense<0xFF800000> : vector<5xf32>
    %94 = vector.multi_reduction <maximumf>, %93, %cst_35 [1] : vector<5x5xf32> to vector<5xf32>
    %95 = vector.shape_cast %94 : vector<5xf32> to vector<5x1xf32>
    %96 = vector.broadcast %95 : vector<5x1xf32> to vector<5x5xf32>
    %97 = arith.subf %93, %96 : vector<5x5xf32>
    %98 = math.exp %97 : vector<5x5xf32>
    %cst_36 = arith.constant dense<0.000000e+00> : vector<5xf32>
    %99 = vector.multi_reduction <add>, %98, %cst_36 [1] : vector<5x5xf32> to vector<5xf32>
    %100 = vector.shape_cast %99 : vector<5xf32> to vector<5x1xf32>
    %101 = tpu.reciprocal %100 {approx = true} : vector<5x1xf32> -> vector<5x1xf32>
    %102 = vector.broadcast %101 : vector<5x1xf32> to vector<5x5xf32>
    %103 = arith.mulf %98, %102 : vector<5x5xf32>
    %104 = arith.truncf %103 : vector<5x5xf32> to vector<5x5xbf16>
    %105 = arith.truncf %90 : vector<5x8xf32> to vector<5x8xbf16>
    %cst_37 = arith.constant dense<0.000000e+00> : vector<5x8xf32>
    %106 = tpu.matmul %104, %105, %cst_37 {dimension_numbers = #tpu.dot_dimension_numbers<[1], [0], [0], [1], [0, 0, 1, 1], [], []>} : vector<5x5xbf16>, vector<5x8xbf16>, vector<5x8xf32> -> vector<5x8xf32>
    %107 = arith.truncf %106 : vector<5x8xf32> to vector<5x8xbf16>
    %108 = vector.extract_strided_slice %40 {offsets = [16, 0], sizes = [8, 32], strides = [1, 1]} : vector<32x32xbf16> to vector<8x32xbf16>
    %cst_38 = arith.constant dense<0.000000e+00> : vector<5x32xf32>
    %109 = tpu.matmul %107, %108, %cst_38 {dimension_numbers = #tpu.dot_dimension_numbers<[1], [0], [0], [1], [0, 0, 1, 1], [], []>} : vector<5x8xbf16>, vector<8x32xbf16>, vector<5x32xf32> -> vector<5x32xf32>
    %110 = arith.addf %87, %109 : vector<5x32xf32>
    %111 = vector.extract_strided_slice %38 {offsets = [0, 24], sizes = [5, 8], strides = [1, 1]} : vector<5x96xf32> to vector<5x8xf32>
    %112 = vector.extract_strided_slice %38 {offsets = [0, 56], sizes = [5, 8], strides = [1, 1]} : vector<5x96xf32> to vector<5x8xf32>
    %113 = vector.extract_strided_slice %38 {offsets = [0, 88], sizes = [5, 8], strides = [1, 1]} : vector<5x96xf32> to vector<5x8xf32>
    %114 = arith.truncf %111 : vector<5x8xf32> to vector<5x8xbf16>
    %115 = arith.truncf %112 : vector<5x8xf32> to vector<5x8xbf16>
    %cst_39 = arith.constant dense<0.000000e+00> : vector<5x5xf32>
    %116 = tpu.matmul %114, %115, %cst_39 {dimension_numbers = #tpu.dot_dimension_numbers<[1], [1], [0], [0], [0, 0, 1, 0], [], []>} : vector<5x8xbf16>, vector<5x8xbf16>, vector<5x5xf32> -> vector<5x5xf32>
    %cst_40 = arith.constant dense<0xFF800000> : vector<5xf32>
    %117 = vector.multi_reduction <maximumf>, %116, %cst_40 [1] : vector<5x5xf32> to vector<5xf32>
    %118 = vector.shape_cast %117 : vector<5xf32> to vector<5x1xf32>
    %119 = vector.broadcast %118 : vector<5x1xf32> to vector<5x5xf32>
    %120 = arith.subf %116, %119 : vector<5x5xf32>
    %121 = math.exp %120 : vector<5x5xf32>
    %cst_41 = arith.constant dense<0.000000e+00> : vector<5xf32>
    %122 = vector.multi_reduction <add>, %121, %cst_41 [1] : vector<5x5xf32> to vector<5xf32>
    %123 = vector.shape_cast %122 : vector<5xf32> to vector<5x1xf32>
    %124 = tpu.reciprocal %123 {approx = true} : vector<5x1xf32> -> vector<5x1xf32>
    %125 = vector.broadcast %124 : vector<5x1xf32> to vector<5x5xf32>
    %126 = arith.mulf %121, %125 : vector<5x5xf32>
    %127 = arith.truncf %126 : vector<5x5xf32> to vector<5x5xbf16>
    %128 = arith.truncf %113 : vector<5x8xf32> to vector<5x8xbf16>
    %cst_42 = arith.constant dense<0.000000e+00> : vector<5x8xf32>
    %129 = tpu.matmul %127, %128, %cst_42 {dimension_numbers = #tpu.dot_dimension_numbers<[1], [0], [0], [1], [0, 0, 1, 1], [], []>} : vector<5x5xbf16>, vector<5x8xbf16>, vector<5x8xf32> -> vector<5x8xf32>
    %130 = arith.truncf %129 : vector<5x8xf32> to vector<5x8xbf16>
    %131 = vector.extract_strided_slice %40 {offsets = [24, 0], sizes = [8, 32], strides = [1, 1]} : vector<32x32xbf16> to vector<8x32xbf16>
    %cst_43 = arith.constant dense<0.000000e+00> : vector<5x32xf32>
    %132 = tpu.matmul %130, %131, %cst_43 {dimension_numbers = #tpu.dot_dimension_numbers<[1], [0], [0], [1], [0, 0, 1, 1], [], []>} : vector<5x8xbf16>, vector<8x32xbf16>, vector<5x32xf32> -> vector<5x32xf32>
    %133 = arith.addf %110, %132 : vector<5x32xf32>
    %134 = arith.addf %4, %133 : vector<5x32xf32>
    %c0_44 = arith.constant 0 : index
    %c0_45 = arith.constant 0 : index
    %c0_46 = arith.constant 0 : index
    %135 = vector.load %arg8[%c0_44, %c0_45, %c0_46] : memref<1x1x32xf32, #tpu.memory_space<vmem>>, vector<1x1x32xf32>
    %136 = vector.shape_cast %135 : vector<1x1x32xf32> to vector<1x32xf32>
    %137 = vector.broadcast %136 : vector<1x32xf32> to vector<5x32xf32>
    %138 = arith.addf %134, %137 : vector<5x32xf32>
    %c0_47 = arith.constant 0 : index
    %c0_48 = arith.constant 0 : index
    %c0_49 = arith.constant 0 : index
    %139 = vector.load %arg9[%c0_47, %c0_48, %c0_49] : memref<1x1x32xf32, #tpu.memory_space<vmem>>, vector<1x1x32xf32>
    %140 = vector.shape_cast %139 : vector<1x1x32xf32> to vector<1x32xf32>
    %c0_50 = arith.constant 0 : index
    %c0_51 = arith.constant 0 : index
    %c0_52 = arith.constant 0 : index
    %141 = vector.load %arg10[%c0_50, %c0_51, %c0_52] : memref<1x1x32xf32, #tpu.memory_space<vmem>>, vector<1x1x32xf32>
    %142 = vector.shape_cast %141 : vector<1x1x32xf32> to vector<1x32xf32>
    %cst_53 = arith.constant dense<0.000000e+00> : vector<5xf32>
    %143 = vector.multi_reduction <add>, %138, %cst_53 [1] : vector<5x32xf32> to vector<5xf32>
    %144 = vector.shape_cast %143 : vector<5xf32> to vector<5x1xf32>
    %cst_54 = arith.constant 3.200000e+01 : f32
    %145 = vector.broadcast %cst_54 : f32 to vector<5x1xf32>
    %146 = arith.divf %144, %145 : vector<5x1xf32>
    %147 = vector.broadcast %146 : vector<5x1xf32> to vector<5x32xf32>
    %148 = arith.subf %138, %147 : vector<5x32xf32>
    %149 = arith.mulf %148, %148 : vector<5x32xf32>
    %cst_55 = arith.constant dense<0.000000e+00> : vector<5xf32>
    %150 = vector.multi_reduction <add>, %149, %cst_55 [1] : vector<5x32xf32> to vector<5xf32>
    %151 = vector.shape_cast %150 : vector<5xf32> to vector<5x1xf32>
    %cst_56 = arith.constant 3.200000e+01 : f32
    %152 = vector.broadcast %cst_56 : f32 to vector<5x1xf32>
    %153 = arith.divf %151, %152 : vector<5x1xf32>
    %154 = vector.broadcast %146 : vector<5x1xf32> to vector<5x32xf32>
    %155 = arith.subf %138, %154 : vector<5x32xf32>
    %cst_57 = arith.constant 9.99999997E-7 : f32
    %156 = vector.broadcast %cst_57 : f32 to vector<5x1xf32>
    %157 = arith.addf %153, %156 : vector<5x1xf32>
    %158 = math.rsqrt %157 : vector<5x1xf32>
    %159 = vector.broadcast %158 : vector<5x1xf32> to vector<5x32xf32>
    %160 = arith.mulf %155, %159 : vector<5x32xf32>
    %161 = vector.broadcast %140 : vector<1x32xf32> to vector<5x32xf32>
    %162 = arith.mulf %160, %161 : vector<5x32xf32>
    %163 = vector.broadcast %142 : vector<1x32xf32> to vector<5x32xf32>
    %164 = arith.addf %162, %163 : vector<5x32xf32>
    %c0_58 = arith.constant 0 : index
    %c0_59 = arith.constant 0 : index
    %c0_60 = arith.constant 0 : index
    %165 = vector.load %arg11[%c0_58, %c0_59, %c0_60] : memref<1x32x128xbf16, #tpu.memory_space<vmem>>, vector<1x32x128xbf16>
    %166 = vector.shape_cast %165 : vector<1x32x128xbf16> to vector<32x128xbf16>
    %167 = arith.truncf %164 : vector<5x32xf32> to vector<5x32xbf16>
    %cst_61 = arith.constant dense<0.000000e+00> : vector<5x128xf32>
    %168 = tpu.matmul %167, %166, %cst_61 {dimension_numbers = #tpu.dot_dimension_numbers<[1], [0], [0], [1], [0, 0, 1, 1], [], []>} : vector<5x32xbf16>, vector<32x128xbf16>, vector<5x128xf32> -> vector<5x128xf32>
    %c0_62 = arith.constant 0 : index
    %c0_63 = arith.constant 0 : index
    %c0_64 = arith.constant 0 : index
    %169 = vector.load %arg12[%c0_62, %c0_63, %c0_64] : memref<1x1x128xf32, #tpu.memory_space<vmem>>, vector<1x1x128xf32>
    %170 = vector.shape_cast %169 : vector<1x1x128xf32> to vector<1x128xf32>
    %171 = vector.broadcast %170 : vector<1x128xf32> to vector<5x128xf32>
    %172 = arith.addf %168, %171 : vector<5x128xf32>
    %cst_65 = arith.constant 5.000000e-01 : f32
    %173 = vector.broadcast %cst_65 : f32 to vector<5x128xf32>
    %174 = arith.mulf %173, %172 : vector<5x128xf32>
    %cst_66 = arith.constant 4.471500e-02 : f32
    %175 = vector.broadcast %cst_66 : f32 to vector<5x128xf32>
    %176 = arith.mulf %175, %172 : vector<5x128xf32>
    %177 = arith.mulf %176, %172 : vector<5x128xf32>
    %178 = arith.mulf %177, %172 : vector<5x128xf32>
    %179 = arith.addf %172, %178 : vector<5x128xf32>
    %cst_67 = arith.constant 0.797884583 : f32
    %180 = vector.broadcast %cst_67 : f32 to vector<5x128xf32>
    %181 = arith.mulf %180, %179 : vector<5x128xf32>
    %182 = math.tanh %181 : vector<5x128xf32>
    %cst_68 = arith.constant 1.000000e+00 : f32
    %183 = vector.broadcast %cst_68 : f32 to vector<5x128xf32>
    %184 = arith.addf %183, %182 : vector<5x128xf32>
    %185 = arith.mulf %174, %184 : vector<5x128xf32>
    %c0_69 = arith.constant 0 : index
    %c0_70 = arith.constant 0 : index
    %c0_71 = arith.constant 0 : index
    %186 = vector.load %arg13[%c0_69, %c0_70, %c0_71] : memref<1x128x32xbf16, #tpu.memory_space<vmem>>, vector<1x128x32xbf16>
    %187 = vector.shape_cast %186 : vector<1x128x32xbf16> to vector<128x32xbf16>
    %188 = arith.truncf %185 : vector<5x128xf32> to vector<5x128xbf16>
    %cst_72 = arith.constant dense<0.000000e+00> : vector<5x32xf32>
    %189 = tpu.matmul %188, %187, %cst_72 {dimension_numbers = #tpu.dot_dimension_numbers<[1], [0], [0], [1], [0, 0, 1, 1], [], []>} : vector<5x128xbf16>, vector<128x32xbf16>, vector<5x32xf32> -> vector<5x32xf32>
    %c0_73 = arith.constant 0 : index
    %c0_74 = arith.constant 0 : index
    %c0_75 = arith.constant 0 : index
    %190 = vector.load %arg14[%c0_73, %c0_74, %c0_75] : memref<1x1x32xf32, #tpu.memory_space<vmem>>, vector<1x1x32xf32>
    %191 = vector.shape_cast %190 : vector<1x1x32xf32> to vector<1x32xf32>
    %192 = vector.broadcast %191 : vector<1x32xf32> to vector<5x32xf32>
    %193 = arith.addf %189, %192 : vector<5x32xf32>
    %194 = arith.addf %138, %193 : vector<5x32xf32>
    %c0_76 = arith.constant 0 : index
    %c0_77 = arith.constant 0 : index
    %c0_78 = arith.constant 0 : index
    %195 = vector.load %arg15[%c0_76, %c0_77, %c0_78] : memref<1x5x32xf32, #tpu.memory_space<vmem>>, vector<1x5x32xf32>
    %196 = vector.shape_cast %195 : vector<1x5x32xf32> to vector<5x32xf32>
    %197 = vector.shape_cast %194 : vector<5x32xf32> to vector<1x5x32xf32>
    tpu.vector_store %arg15[%c0_76, %c0_77, %c0_78], %197 {strides = array<i32>} : memref<1x5x32xf32, #tpu.memory_space<vmem>>, vector<1x5x32xf32>,
    return
  }
  func.func @transform_0(%arg0: i32, %arg1: i32) -> (i32, i32, i32) {
    %c0_i32 = arith.constant 0 : i32
    %c0_i32_0 = arith.constant 0 : i32
    %c0_i32_1 = arith.constant 0 : i32
    return %arg0, %c0_i32, %c0_i32_0 : i32, i32, i32
  }
  func.func @transform_1(%arg0: i32, %arg1: i32) -> (i32, i32, i32) {
    %c0_i32 = arith.constant 0 : i32
    %c0_i32_0 = arith.constant 0 : i32
    %c0_i32_1 = arith.constant 0 : i32
    return %arg1, %c0_i32, %c0_i32_0 : i32, i32, i32
  }
  func.func @transform_2(%arg0: i32, %arg1: i32) -> (i32, i32, i32) {
    %c0_i32 = arith.constant 0 : i32
    %c0_i32_0 = arith.constant 0 : i32
    %c0_i32_1 = arith.constant 0 : i32
    return %arg1, %c0_i32, %c0_i32_0 : i32, i32, i32
  }
  func.func @transform_3(%arg0: i32, %arg1: i32) -> (i32, i32, i32) {
    %c0_i32 = arith.constant 0 : i32
    %c0_i32_0 = arith.constant 0 : i32
    %c0_i32_1 = arith.constant 0 : i32
    return %arg1, %c0_i32, %c0_i32_0 : i32, i32, i32
  }
  func.func @transform_4(%arg0: i32, %arg1: i32) -> (i32, i32, i32) {
    %c0_i32 = arith.constant 0 : i32
    %c0_i32_0 = arith.constant 0 : i32
    %c0_i32_1 = arith.constant 0 : i32
    return %arg1, %c0_i32, %c0_i32_0 : i32, i32, i32
  }
  func.func @transform_5(%arg0: i32, %arg1: i32) -> (i32, i32, i32) {
    %c0_i32 = arith.constant 0 : i32
    %c0_i32_0 = arith.constant 0 : i32
    %c0_i32_1 = arith.constant 0 : i32
    return %arg1, %c0_i32, %c0_i32_0 : i32, i32, i32
  }
  func.func @transform_6(%arg0: i32, %arg1: i32) -> (i32, i32, i32) {
    %c0_i32 = arith.constant 0 : i32
    %c0_i32_0 = arith.constant 0 : i32
    %c0_i32_1 = arith.constant 0 : i32
    return %arg1, %c0_i32, %c0_i32_0 : i32, i32, i32
  }
  func.func @transform_7(%arg0: i32, %arg1: i32) -> (i32, i32, i32) {
    %c0_i32 = arith.constant 0 : i32
    %c0_i32_0 = arith.constant 0 : i32
    %c0_i32_1 = arith.constant 0 : i32
    return %arg1, %c0_i32, %c0_i32_0 : i32, i32, i32
  }
  func.func @transform_8(%arg0: i32, %arg1: i32) -> (i32, i32, i32) {
    %c0_i32 = arith.constant 0 : i32
    %c0_i32_0 = arith.constant 0 : i32
    %c0_i32_1 = arith.constant 0 : i32
    return %arg1, %c0_i32, %c0_i32_0 : i32, i32, i32
  }
  func.func @transform_9(%arg0: i32, %arg1: i32) -> (i32, i32, i32) {
    %c0_i32 = arith.constant 0 : i32
    %c0_i32_0 = arith.constant 0 : i32
    %c0_i32_1 = arith.constant 0 : i32
    return %arg1, %c0_i32, %c0_i32_0 : i32, i32, i32
  }
  func.func @transform_10(%arg0: i32, %arg1: i32) -> (i32, i32, i32) {
    %c0_i32 = arith.constant 0 : i32
    %c0_i32_0 = arith.constant 0 : i32
    %c0_i32_1 = arith.constant 0 : i32
    return %arg1, %c0_i32, %c0_i32_0 : i32, i32, i32
  }
  func.func @transform_11(%arg0: i32, %arg1: i32) -> (i32, i32, i32) {
    %c0_i32 = arith.constant 0 : i32
    %c0_i32_0 = arith.constant 0 : i32
    %c0_i32_1 = arith.constant 0 : i32
    return %arg1, %c0_i32, %c0_i32_0 : i32, i32, i32
  }
  func.func @transform_12(%arg0: i32, %arg1: i32) -> (i32, i32, i32) {
    %c0_i32 = arith.constant 0 : i32
    %c0_i32_0 = arith.constant 0 : i32
    %c0_i32_1 = arith.constant 0 : i32
    return %arg1, %c0_i32, %c0_i32_0 : i32, i32, i32
  }
  func.func @transform_13(%arg0: i32, %arg1: i32) -> (i32, i32, i32) {
    %c0_i32 = arith.constant 0 : i32
    %c0_i32_0 = arith.constant 0 : i32
    %c0_i32_1 = arith.constant 0 : i32
    return %arg0, %c0_i32, %c0_i32_0 : i32, i32, i32
  }
}

</mosaic_0001>

<llo_original>
// kernel: dino_peft_forward.2
$region0: #{dino_peft_forward.2}
  #allocation0 [shape = 'u32[]', space=smem, size = 0x4, offset = 0x4, fixed_abs, tag = 'smem constant byte address 0x4 - core index']
  #allocation1 [shape = 'u32[72,128]{1,0:T(1,128)}', space=vmem, size = 0x9000, scoped, tag = 'internal scratch']
  %s0 = inlined_call_operand.vmem [shape: f32[2,5,192], index: 0, kind: input, shape index: {}]
  %s1 = inlined_call_operand.vmem [shape: bf16[192,32], index: 1, kind: input, shape index: {}]
  %s2 = inlined_call_operand.vmem [shape: f32[5,32], index: 2, kind: input, shape index: {}]
  %s3 = inlined_call_operand.vmem [shape: f32[2,5,32], index: 3, kind: output, shape index: {}]
  %s4 = sld [smem:[#allocation0]]
  $region45: #{dino_peft_forward.2} parent=0
    _
  %s6 = ssub.s32 1, %s4
  %s7 = scalar_select 0, %s6, %s4
  loop: start=0, step=1, limit=4
  $region2: #{dino_peft_forward.2} parent=0 // loop_pre_header
    _
  $region3: #{dino_peft_forward.2} parent=0 // loop_header
    %s9 = sphi 0, %s13
    %p10 = scmp.ge.s32.totalorder %s9, 4
    %s19 = sphi 0, %s21
    %s22 = sphi 0, %s19
    %s23 = sphi 0, %s22
    %s39 = sphi 0, %s23
    %s43 = sphi 0, %s43
    %s45 = sphi 0, %s43
    %s46 = sphi 0, %s45
    %s60 = sphi 0, %s46
    %s64 = sphi 0, %s64
    %s66 = sphi 0, %s64
    %s67 = sphi 0, %s66
    %s81 = sphi 0, %s67
    %s87 = sphi 0, %s89
    %s90 = sphi 0, %s87
    %s91 = sphi 0, %s90
    %s107 = sphi 0, %s91
  $region4: #{dino_peft_forward.2} parent=0 // loop_header_branch
    %12 = sbr.rel (%p10) target = $region8
  $region5: #{dino_peft_forward.2} parent=0 // loop_body
    %s14 = ssub.s32 %s9, 1
    %s15 = ssub.s32 %s9, 2
    %s16 = sadd.s32 %s9, 1
    %s17 = ssub.s32 %s9, %s16
    %p18 = scmp.eq.s32.totalorder %s17, 0
    %s20 = sadd.s32 %s19, 1
    %s21 = scalar_select %p18, %s19, %s20
    %p24 = pneg %p18
    %p25 = scmp.eq.s32.totalorder %s9, 1
    %p26 = por %p24, %p25
    %p27 = scmp.ne.s32.totalorder %s19, %s22
    %p28 = scmp.eq.s32.totalorder %s9, 0
    %p29 = por %p27, %p28
    %p30 = scmp.ne.s32.totalorder %s19, %s22
    %p31 = scmp.eq.s32.totalorder %s14, 1
    %p32 = por %p30, %p31
    %p33 = scmp.ne.s32.totalorder %s22, %s23
    %p34 = scmp.eq.s32.totalorder %s14, 0
    %p35 = por %p33, %p34
    %p36 = scmp.ne.s32.totalorder %s22, %s23
    %p37 = scmp.eq.s32.totalorder %s15, 1
    %p38 = por %p36, %p37
    %p40 = scmp.ne.s32.totalorder %s23, %s39
    %p41 = scmp.eq.s32.totalorder %s15, 0
    %p42 = por %p40, %p41
    %s44 = sadd.s32 %s43, 1
    %p47 = scmp.eq.s32.totalorder %s9, 1
    %p48 = scmp.ne.s32.totalorder %s43, %s45
    %p49 = scmp.eq.s32.totalorder %s9, 0
    %p50 = por %p48, %p49
    %p51 = scmp.ne.s32.totalorder %s43, %s45
    %p52 = scmp.eq.s32.totalorder %s14, 1
    %p53 = por %p51, %p52
    %p54 = scmp.ne.s32.totalorder %s45, %s46
    %p55 = scmp.eq.s32.totalorder %s14, 0
    %p56 = por %p54, %p55
    %p57 = scmp.ne.s32.totalorder %s45, %s46
    %p58 = scmp.eq.s32.totalorder %s15, 1
    %p59 = por %p57, %p58
    %p61 = scmp.ne.s32.totalorder %s46, %s60
    %p62 = scmp.eq.s32.totalorder %s15, 0
    %p63 = por %p61, %p62
    %s65 = sadd.s32 %s64, 1
    %p68 = scmp.eq.s32.totalorder %s9, 1
    %p69 = scmp.ne.s32.totalorder %s64, %s66
    %p70 = scmp.eq.s32.totalorder %s9, 0
    %p71 = por %p69, %p70
    %p72 = scmp.ne.s32.totalorder %s64, %s66
    %p73 = scmp.eq.s32.totalorder %s14, 1
    %p74 = por %p72, %p73
    %p75 = scmp.ne.s32.totalorder %s66, %s67
    %p76 = scmp.eq.s32.totalorder %s14, 0
    %p77 = por %p75, %p76
    %p78 = scmp.ne.s32.totalorder %s66, %s67
    %p79 = scmp.eq.s32.totalorder %s15, 1
    %p80 = por %p78, %p79
    %p82 = scmp.ne.s32.totalorder %s67, %s81
    %p83 = scmp.eq.s32.totalorder %s15, 0
    %p84 = por %p82, %p83
    %s85 = ssub.s32 %s9, %s16
    %p86 = scmp.eq.s32.totalorder %s85, 0
    %s88 = sadd.s32 %s87, 1
    %s89 = scalar_select %p86, %s87, %s88
    %p92 = pneg %p86
    %p93 = scmp.eq.s32.totalorder %s9, 1
    %p94 = por %p92, %p93
    %p95 = scmp.ne.s32.totalorder %s87, %s90
    %p96 = scmp.eq.s32.totalorder %s9, 0
    %p97 = por %p95, %p96
    %p98 = scmp.ne.s32.totalorder %s87, %s90
    %p99 = scmp.eq.s32.totalorder %s14, 1
    %p100 = por %p98, %p99
    %p101 = scmp.ne.s32.totalorder %s90, %s91
    %p102 = scmp.eq.s32.totalorder %s14, 0
    %p103 = por %p101, %p102
    %p104 = scmp.ne.s32.totalorder %s90, %s91
    %p105 = scmp.eq.s32.totalorder %s15, 1
    %p106 = por %p104, %p105
    %p108 = scmp.ne.s32.totalorder %s91, %s107
    %p109 = scmp.eq.s32.totalorder %s15, 0
    %p110 = por %p108, %p109
    %p111 = scmp.le.s32.totalorder 1, %s9
    %p112 = scmp.lt.s32.totalorder %s9, 3
    %p113 = pnand %p111, %p112
    %p114 = pneg %p113
    // Predicated region
    $region9: #{dino_peft_forward.2} parent=5 // pred_check
      _
    $region10: #{dino_peft_forward.2} parent=5 // pred_check_branch
      %116 = sbr.rel (%p113) target = $region12
    $region11: #{dino_peft_forward.2} parent=5 // pred_region
      %s117 = ssub.s32 %s9, 1
      // Predicated region
      $region13: #{dino_peft_forward.2} parent=11 // pred_check
        %p118 = pneg %p56
      $region14: #{dino_peft_forward.2} parent=11 // pred_check_branch
        %120 = sbr.rel (%p118) target = $region16
      $region15: #{dino_peft_forward.2} parent=11 // pred_region
        _
      $region16: #{dino_peft_forward.2} parent=11 // pred_fallthru
        _
      // Predicated region
      $region17: #{dino_peft_forward.2} parent=11 // pred_check
        %p121 = pneg %p77
      $region18: #{dino_peft_forward.2} parent=11 // pred_check_branch
        %123 = sbr.rel (%p121) target = $region20
      $region19: #{dino_peft_forward.2} parent=11 // pred_region
        _
      $region20: #{dino_peft_forward.2} parent=11 // pred_fallthru
        _
    $region12: #{dino_peft_forward.2} parent=5 // pred_fallthru
      _
    %p124 = scmp.lt.s32.totalorder %s9, 2
    // Predicated region
    $region21: #{dino_peft_forward.2} parent=5 // pred_check
      %p125 = pneg %p124
    $region22: #{dino_peft_forward.2} parent=5 // pred_check_branch
      %127 = sbr.rel (%p125) target = $region24
    $region23: #{dino_peft_forward.2} parent=5 // pred_region
      // Predicated region
      $region25: #{dino_peft_forward.2} parent=23 // pred_check
        %p128 = pneg %p29
      $region26: #{dino_peft_forward.2} parent=23 // pred_check_branch
        %130 = sbr.rel (%p128) target = $region28
      $region27: #{dino_peft_forward.2} parent=23 // pred_region
        %p131 = scmp.lt.s32.totalorder %s9, 1
        %s132 = scalar_select %p131, %s9, 1
        %s133 = smul.addr %s132, 2
        %s134 = smul.addr %s133, 8
        %s135 = scalar_lea.vmem %s0, %s134
      $region28: #{dino_peft_forward.2} parent=23 // pred_fallthru
        _
    $region24: #{dino_peft_forward.2} parent=5 // pred_fallthru
      _
    %p136 = scmp.le.s32.totalorder 1, %s9
    %p137 = scmp.lt.s32.totalorder %s9, 3
    %p138 = pnand %p136, %p137
    %p139 = pneg %p138
    // Predicated region
    $region29: #{dino_peft_forward.2} parent=5 // pred_check
      _
    $region30: #{dino_peft_forward.2} parent=5 // pred_check_branch
      %141 = sbr.rel (%p138) target = $region32
    $region31: #{dino_peft_forward.2} parent=5 // pred_region
      %s142 = ssub.s32 %s9, 1
      %p143 = scmp.lt.s32.totalorder %s14, 1
      %s144 = scalar_select %p143, %s14, 1
      %s145 = smul.addr %s144, 2
      %s146 = smul.addr %s145, 8
      %s147 = scalar_lea.vmem %s0, %s146
      %p148 = pneg %p35
      %p149 = pneg %p32
      %p150 = pneg %p56
      %p151 = pneg %p53
      %p152 = pneg %p77
      %p153 = pneg %p74
      %p154 = pneg %p103
      %p155 = pneg %p100
      %p156 = scmp.lt.s32.totalorder %s14, 1
      %s157 = scalar_select %p156, %s14, 1
      %s158 = smul.addr %s157, 8
      %s159 = scalar_lea.vmem %s3, %s158
      %p160 = scmp.lt.s32.totalorder %s14, 1
      %s161 = scalar_select %p160, %s14, 1
      %s162 = smul.addr %s161, 2
      %s163 = smul.addr %s162, 8
      %s164 = scalar_lea.vmem %s0, %s163
      %p165 = scmp.lt.s32.totalorder %s14, 1
      %s166 = scalar_select %p165, %s14, 1
      %s167 = smul.addr %s166, 8
      %s168 = scalar_lea.vmem %s3, %s167
      %v170 = vld [vmem:[%s164] sm:$0x1f]
      %v171 = vld [vmem:[%s164 + $0x8] sm:$0x1f]
      %v172 = vld [vmem:[%s1] sm:$0xf]
      %v173 = vld [vmem:[%s1 + $0x4] sm:$0xf]
      %v174 = vld [vmem:[%s1 + $0x8] sm:$0xf]
      %v175 = vld [vmem:[%s1 + $0xc] sm:$0xf]
      %v176 = vld [vmem:[%s1 + $0x10] sm:$0xf]
      %v177 = vld [vmem:[%s1 + $0x14] sm:$0xf]
      %v178 = vld [vmem:[%s1 + $0x18] sm:$0xf]
      %v179 = vld [vmem:[%s1 + $0x1c] sm:$0xf]
      %v180 = vld [vmem:[%s1 + $0x20] sm:$0xf]
      %v181 = vld [vmem:[%s1 + $0x24] sm:$0xf]
      %v182 = vld [vmem:[%s1 + $0x28] sm:$0xf]
      %v183 = vld [vmem:[%s1 + $0x2c] sm:$0xf]
      %v184 = vld [vmem:[%s1 + $0x30] sm:$0xf]
      %v185 = vld [vmem:[%s1 + $0x34] sm:$0xf]
      %v186 = vld [vmem:[%s1 + $0x38] sm:$0xf]
      %v187 = vld [vmem:[%s1 + $0x3c] sm:$0xf]
      %v188 = vld [vmem:[%s1 + $0x40] sm:$0xf]
      %v189 = vld [vmem:[%s1 + $0x44] sm:$0xf]
      %v190 = vld [vmem:[%s1 + $0x48] sm:$0xf]
      %v191 = vld [vmem:[%s1 + $0x4c] sm:$0xf]
      %v192 = vld [vmem:[%s1 + $0x50] sm:$0xf]
      %v193 = vld [vmem:[%s1 + $0x54] sm:$0xf]
      %v194 = vld [vmem:[%s1 + $0x58] sm:$0xf]
      %v195 = vld [vmem:[%s1 + $0x5c] sm:$0xf]
      %v196 = vpack.c.bf16 %v170, %v170
      %v197 = vpack.c.bf16 %v171, %v171
      %v198 = vld [vmem:[%s2] sm:$0x1f]
      %v223 = vunpack.c.l.b16 %v172
      %v224 = vunpack.c.l.b16 %v173
      %v225 = vunpack.c.l.b16 %v174
      %v226 = vunpack.c.l.b16 %v175
      %v227 = vunpack.c.l.b16 %v176
      %v228 = vunpack.c.l.b16 %v177
      %v229 = vunpack.c.l.b16 %v178
      %v230 = vunpack.c.l.b16 %v179
      %v231 = vunpack.c.l.b16 %v180
      %v232 = vunpack.c.l.b16 %v181
      %v233 = vunpack.c.l.b16 %v182
      %v234 = vunpack.c.l.b16 %v183
      %v235 = vunpack.c.l.b16 %v184
      %v236 = vunpack.c.l.b16 %v185
      %v237 = vunpack.c.l.b16 %v186
      %v238 = vunpack.c.l.b16 %v187
      %v239 = vunpack.c.l.b16 %v188
      %v240 = vunpack.c.l.b16 %v189
      %v241 = vunpack.c.l.b16 %v190
      %v242 = vunpack.c.l.b16 %v191
      %v243 = vunpack.c.l.b16 %v192
      %v244 = vunpack.c.l.b16 %v193
      %v245 = vunpack.c.l.b16 %v194
      %v246 = vunpack.c.l.b16 %v195
      %v247 = vpack.c.b16 %v224, %v223
      %v248 = vpack.c.b16 %v226, %v225
      %v249 = vpack.c.b16 %v228, %v227
      %v250 = vpack.c.b16 %v230, %v229
      %v251 = vpack.c.b16 %v232, %v231
      %v252 = vpack.c.b16 %v234, %v233
      %v253 = vpack.c.b16 %v236, %v235
      %v254 = vpack.c.b16 %v238, %v237
      %v255 = vpack.c.b16 %v240, %v239
      %v256 = vpack.c.b16 %v242, %v241
      %v257 = vpack.c.b16 %v244, %v243
      %v258 = vpack.c.b16 %v246, %v245
      %vm271 = vcmask 523264
      %v273 = vsel %vm271, %v197, 0
      %275 = vmatpush.bf16.msra.mxu0 %v254
      %276 = vmatpush.bf16.msra.mxu0 %v253
      %277 = vmatpush.bf16.msra.mxu0 %v252
      %278 = vmatpush.bf16.msra.mxu0 %v251
      %279 = vmatpush.bf16.msra.mxu0 %v250
      %280 = vmatpush.bf16.msra.mxu0 %v249
      %281 = vmatpush.bf16.msra.mxu0 %v248
      %282 = vmatpush.bf16.msra.mxu0 %v247
      %283 = vmatmul.bf16.gmra.mxu0 %v196
      %v284 = vpop.f32.mrf.mxu0
      %v285 = vadd.f32 %v198, %v284
      %v286 = vpop.f32.mrf.mxu0
      %287 = vdwg.mxu0
      %288 = vmatpush.bf16.msra.mxu0 0
      %289 = vmatpush.bf16.msra.mxu0 0
      %290 = vmatpush.bf16.msra.mxu0 0
      %291 = vmatpush.bf16.msra.mxu0 0
      %292 = vmatpush.bf16.msra.mxu0 %v258
      %293 = vmatpush.bf16.msra.mxu0 %v257
      %294 = vmatpush.bf16.msra.mxu0 %v256
      %295 = vmatpush.bf16.msra.mxu0 %v255
      %296 = vmatmul.bf16.gmra.mxu0 %v273
      %v297 = vpop.f32.mrf.mxu0
      %v298 = vadd.f32 %v285, %v297
      %v299 = vpop.f32.mrf.mxu0
      %300 = vdwg.mxu0
      %vm301 = vcmask 258048
      %302 = vst.msk [vmem:[%s168] sm:$0x1f] %vm301, %v298
      %p303 = scmp.lt.s32.totalorder %s14, 1
      %s304 = scalar_select %p303, %s14, 1
      %s305 = smul.addr %s304, 8
      %s306 = scalar_lea.vmem %s3, %s305
      // Predicated region
      $region33: #{dino_peft_forward.2} parent=31 // pred_check
        %p307 = pneg %p100
      $region34: #{dino_peft_forward.2} parent=31 // pred_check_branch
        %309 = sbr.rel (%p307) target = $region36
      $region35: #{dino_peft_forward.2} parent=31 // pred_region
        _
      $region36: #{dino_peft_forward.2} parent=31 // pred_fallthru
        _
    $region32: #{dino_peft_forward.2} parent=5 // pred_fallthru
      _
    %p310 = scmp.le.s32.totalorder 2, %s9
    // Predicated region
    $region37: #{dino_peft_forward.2} parent=5 // pred_check
      %p311 = pneg %p310
    $region38: #{dino_peft_forward.2} parent=5 // pred_check_branch
      %313 = sbr.rel (%p311) target = $region40
    $region39: #{dino_peft_forward.2} parent=5 // pred_region
      %s314 = ssub.s32 %s9, 2
      // Predicated region
      $region41: #{dino_peft_forward.2} parent=39 // pred_check
        %p315 = pneg %p106
      $region42: #{dino_peft_forward.2} parent=39 // pred_check_branch
        %317 = sbr.rel (%p315) target = $region44
      $region43: #{dino_peft_forward.2} parent=39 // pred_region
        %p318 = scmp.lt.s32.totalorder %s15, 1
        %s319 = scalar_select %p318, %s15, 1
        %s320 = smul.addr %s319, 8
        %s321 = scalar_lea.vmem %s3, %s320
      $region44: #{dino_peft_forward.2} parent=39 // pred_fallthru
        _
    $region40: #{dino_peft_forward.2} parent=5 // pred_fallthru
      _
  $region6: #{dino_peft_forward.2} parent=0 // loop_footer
    %s13 = sadd.s32 1, %s9
  $region7: #{dino_peft_forward.2} parent=0 // loop_footer_branch
    %8 = sbr.rel target = $region3
  $region8: #{dino_peft_forward.2} parent=0 // loop_exit
    _

// kernel: dino_peft_forward.3
$region0: #{dino_peft_forward.3}
  #allocation0 [shape = 'u32[]', space=smem, size = 0x4, offset = 0x4, fixed_abs, tag = 'smem constant byte address 0x4 - core index']
  #allocation1 [shape = 'u32[72,128]{1,0:T(1,128)}', space=vmem, size = 0x9000, scoped, tag = 'internal scratch']
  %s0 = inlined_call_operand.vmem [shape: f32[2,5,32], index: 0, kind: input, shape index: {}, may-alias: {0,13}]
  %s1 = inlined_call_operand.vmem [shape: f32[2,1,32], index: 1, kind: input, shape index: {}]
  %s2 = inlined_call_operand.vmem [shape: f32[2,1,32], index: 2, kind: input, shape index: {}]
  %s3 = inlined_call_operand.vmem [shape: bf16[2,32,96], index: 3, kind: input, shape index: {}]
  %s4 = inlined_call_operand.vmem [shape: f32[2,1,96], index: 4, kind: input, shape index: {}]
  %s5 = inlined_call_operand.vmem [shape: bf16[2,32,32], index: 5, kind: input, shape index: {}]
  %s6 = inlined_call_operand.vmem [shape: f32[2,1,32], index: 6, kind: input, shape index: {}]
  %s7 = inlined_call_operand.vmem [shape: f32[2,1,32], index: 7, kind: input, shape index: {}]
  %s8 = inlined_call_operand.vmem [shape: f32[2,1,32], index: 8, kind: input, shape index: {}]
  %s9 = inlined_call_operand.vmem [shape: bf16[2,32,128], index: 9, kind: input, shape index: {}]
  %s10 = inlined_call_operand.vmem [shape: f32[2,1,128], index: 10, kind: input, shape index: {}]
  %s11 = inlined_call_operand.vmem [shape: bf16[2,128,32], index: 11, kind: input, shape index: {}]
  %s12 = inlined_call_operand.vmem [shape: f32[2,1,32], index: 12, kind: input, shape index: {}]
  %s13 = inlined_call_operand.vmem [shape: f32[2,5,32], index: 13, kind: output, shape index: {}, may-alias: {0,13}]
  %s14 = sld [smem:[#allocation0]]
  $region89: #{dino_peft_forward.3} parent=0
    _
  %s16 = ssub.s32 1, %s14
  %s17 = scalar_select 0, %s16, %s14
  loop: start=0, step=1, limit=6
  $region2: #{dino_peft_forward.3} parent=0 // loop_pre_header
    _
  $region3: #{dino_peft_forward.3} parent=0 // loop_header
    %s19 = sphi 0, %s23
    %p20 = scmp.ge.s32.totalorder %s19, 6
    %s26 = sphi 0, %s38
    %s27 = sphi 0, %s34
    %s28 = sphi 0, %s26
    %s29 = sphi 0, %s27
    %s30 = sphi 0, %s28
    %s31 = sphi 0, %s29
    %s41 = sphi 0, %s43
    %s44 = sphi 0, %s41
    %s45 = sphi 0, %s44
    %s61 = sphi 0, %s45
    %s67 = sphi 0, %s69
    %s70 = sphi 0, %s67
    %s71 = sphi 0, %s70
    %s87 = sphi 0, %s71
    %s93 = sphi 0, %s95
    %s96 = sphi 0, %s93
    %s97 = sphi 0, %s96
    %s113 = sphi 0, %s97
    %s119 = sphi 0, %s121
    %s122 = sphi 0, %s119
    %s123 = sphi 0, %s122
    %s139 = sphi 0, %s123
    %s145 = sphi 0, %s147
    %s148 = sphi 0, %s145
    %s149 = sphi 0, %s148
    %s165 = sphi 0, %s149
    %s171 = sphi 0, %s173
    %s174 = sphi 0, %s171
    %s175 = sphi 0, %s174
    %s191 = sphi 0, %s175
    %s197 = sphi 0, %s199
    %s200 = sphi 0, %s197
    %s201 = sphi 0, %s200
    %s217 = sphi 0, %s201
    %s223 = sphi 0, %s225
    %s226 = sphi 0, %s223
    %s227 = sphi 0, %s226
    %s243 = sphi 0, %s227
    %s249 = sphi 0, %s251
    %s252 = sphi 0, %s249
    %s253 = sphi 0, %s252
    %s269 = sphi 0, %s253
    %s275 = sphi 0, %s277
    %s278 = sphi 0, %s275
    %s279 = sphi 0, %s278
    %s295 = sphi 0, %s279
    %s301 = sphi 0, %s303
    %s304 = sphi 0, %s301
    %s305 = sphi 0, %s304
    %s321 = sphi 0, %s305
    %s327 = sphi 0, %s329
    %s330 = sphi 0, %s327
    %s331 = sphi 0, %s330
    %s347 = sphi 0, %s331
    %s353 = sphi 0, %s355
    %s356 = sphi 0, %s353
    %s357 = sphi 0, %s356
    %s373 = sphi 0, %s357
    %s379 = sphi 0, %s381
    %s382 = sphi 0, %s379
    %s383 = sphi 0, %s382
    %s399 = sphi 0, %s383
  $region4: #{dino_peft_forward.3} parent=0 // loop_header_branch
    %22 = sbr.rel (%p20) target = $region8
  $region5: #{dino_peft_forward.3} parent=0 // loop_body
    %s24 = ssub.s32 %s19, 1
    %s25 = ssub.s32 %s19, 2
    %s32 = sadd.s32 1, %s27
    %p33 = scmp.ge.s32.totalorder %s32, 2
    %s34 = scalar_select %p33, 0, %s32
    %s35 = sadd.s32 1, %s26
    %s36 = scalar_select %p33, %s35, %s26
    %p37 = scmp.ge.s32.totalorder %s36, 2
    %s38 = scalar_select %p37, 0, %s36
    %s39 = ssub.s32 %s26, %s38
    %p40 = scmp.eq.s32.totalorder %s39, 0
    %s42 = sadd.s32 %s41, 1
    %s43 = scalar_select %p40, %s41, %s42
    %p46 = pneg %p40
    %p47 = scmp.eq.s32.totalorder %s19, 3
    %p48 = por %p46, %p47
    %p49 = scmp.ne.s32.totalorder %s41, %s44
    %p50 = scmp.eq.s32.totalorder %s19, 0
    %p51 = por %p49, %p50
    %p52 = scmp.ne.s32.totalorder %s41, %s44
    %p53 = scmp.eq.s32.totalorder %s24, 3
    %p54 = por %p52, %p53
    %p55 = scmp.ne.s32.totalorder %s44, %s45
    %p56 = scmp.eq.s32.totalorder %s24, 0
    %p57 = por %p55, %p56
    %p58 = scmp.ne.s32.totalorder %s44, %s45
    %p59 = scmp.eq.s32.totalorder %s25, 3
    %p60 = por %p58, %p59
    %p62 = scmp.ne.s32.totalorder %s45, %s61
    %p63 = scmp.eq.s32.totalorder %s25, 0
    %p64 = por %p62, %p63
    %s65 = ssub.s32 %s27, %s34
    %p66 = scmp.eq.s32.totalorder %s65, 0
    %s68 = sadd.s32 %s67, 1
    %s69 = scalar_select %p66, %s67, %s68
    %p72 = pneg %p66
    %p73 = scmp.eq.s32.totalorder %s19, 3
    %p74 = por %p72, %p73
    %p75 = scmp.ne.s32.totalorder %s67, %s70
    %p76 = scmp.eq.s32.totalorder %s19, 0
    %p77 = por %p75, %p76
    %p78 = scmp.ne.s32.totalorder %s67, %s70
    %p79 = scmp.eq.s32.totalorder %s24, 3
    %p80 = por %p78, %p79
    %p81 = scmp.ne.s32.totalorder %s70, %s71
    %p82 = scmp.eq.s32.totalorder %s24, 0
    %p83 = por %p81, %p82
    %p84 = scmp.ne.s32.totalorder %s70, %s71
    %p85 = scmp.eq.s32.totalorder %s25, 3
    %p86 = por %p84, %p85
    %p88 = scmp.ne.s32.totalorder %s71, %s87
    %p89 = scmp.eq.s32.totalorder %s25, 0
    %p90 = por %p88, %p89
    %s91 = ssub.s32 %s27, %s34
    %p92 = scmp.eq.s32.totalorder %s91, 0
    %s94 = sadd.s32 %s93, 1
    %s95 = scalar_select %p92, %s93, %s94
    %p98 = pneg %p92
    %p99 = scmp.eq.s32.totalorder %s19, 3
    %p100 = por %p98, %p99
    %p101 = scmp.ne.s32.totalorder %s93, %s96
    %p102 = scmp.eq.s32.totalorder %s19, 0
    %p103 = por %p101, %p102
    %p104 = scmp.ne.s32.totalorder %s93, %s96
    %p105 = scmp.eq.s32.totalorder %s24, 3
    %p106 = por %p104, %p105
    %p107 = scmp.ne.s32.totalorder %s96, %s97
    %p108 = scmp.eq.s32.totalorder %s24, 0
    %p109 = por %p107, %p108
    %p110 = scmp.ne.s32.totalorder %s96, %s97
    %p111 = scmp.eq.s32.totalorder %s25, 3
    %p112 = por %p110, %p111
    %p114 = scmp.ne.s32.totalorder %s97, %s113
    %p115 = scmp.eq.s32.totalorder %s25, 0
    %p116 = por %p114, %p115
    %s117 = ssub.s32 %s27, %s34
    %p118 = scmp.eq.s32.totalorder %s117, 0
    %s120 = sadd.s32 %s119, 1
    %s121 = scalar_select %p118, %s119, %s120
    %p124 = pneg %p118
    %p125 = scmp.eq.s32.totalorder %s19, 3
    %p126 = por %p124, %p125
    %p127 = scmp.ne.s32.totalorder %s119, %s122
    %p128 = scmp.eq.s32.totalorder %s19, 0
    %p129 = por %p127, %p128
    %p130 = scmp.ne.s32.totalorder %s119, %s122
    %p131 = scmp.eq.s32.totalorder %s24, 3
    %p132 = por %p130, %p131
    %p133 = scmp.ne.s32.totalorder %s122, %s123
    %p134 = scmp.eq.s32.totalorder %s24, 0
    %p135 = por %p133, %p134
    %p136 = scmp.ne.s32.totalorder %s122, %s123
    %p137 = scmp.eq.s32.totalorder %s25, 3
    %p138 = por %p136, %p137
    %p140 = scmp.ne.s32.totalorder %s123, %s139
    %p141 = scmp.eq.s32.totalorder %s25, 0
    %p142 = por %p140, %p141
    %s143 = ssub.s32 %s27, %s34
    %p144 = scmp.eq.s32.totalorder %s143, 0
    %s146 = sadd.s32 %s145, 1
    %s147 = scalar_select %p144, %s145, %s146
    %p150 = pneg %p144
    %p151 = scmp.eq.s32.totalorder %s19, 3
    %p152 = por %p150, %p151
    %p153 = scmp.ne.s32.totalorder %s145, %s148
    %p154 = scmp.eq.s32.totalorder %s19, 0
    %p155 = por %p153, %p154
    %p156 = scmp.ne.s32.totalorder %s145, %s148
    %p157 = scmp.eq.s32.totalorder %s24, 3
    %p158 = por %p156, %p157
    %p159 = scmp.ne.s32.totalorder %s148, %s149
    %p160 = scmp.eq.s32.totalorder %s24, 0
    %p161 = por %p159, %p160
    %p162 = scmp.ne.s32.totalorder %s148, %s149
    %p163 = scmp.eq.s32.totalorder %s25, 3
    %p164 = por %p162, %p163
    %p166 = scmp.ne.s32.totalorder %s149, %s165
    %p167 = scmp.eq.s32.totalorder %s25, 0
    %p168 = por %p166, %p167
    %s169 = ssub.s32 %s27, %s34
    %p170 = scmp.eq.s32.totalorder %s169, 0
    %s172 = sadd.s32 %s171, 1
    %s173 = scalar_select %p170, %s171, %s172
    %p176 = pneg %p170
    %p177 = scmp.eq.s32.totalorder %s19, 3
    %p178 = por %p176, %p177
    %p179 = scmp.ne.s32.totalorder %s171, %s174
    %p180 = scmp.eq.s32.totalorder %s19, 0
    %p181 = por %p179, %p180
    %p182 = scmp.ne.s32.totalorder %s171, %s174
    %p183 = scmp.eq.s32.totalorder %s24, 3
    %p184 = por %p182, %p183
    %p185 = scmp.ne.s32.totalorder %s174, %s175
    %p186 = scmp.eq.s32.totalorder %s24, 0
    %p187 = por %p185, %p186
    %p188 = scmp.ne.s32.totalorder %s174, %s175
    %p189 = scmp.eq.s32.totalorder %s25, 3
    %p190 = por %p188, %p189
    %p192 = scmp.ne.s32.totalorder %s175, %s191
    %p193 = scmp.eq.s32.totalorder %s25, 0
    %p194 = por %p192, %p193
    %s195 = ssub.s32 %s27, %s34
    %p196 = scmp.eq.s32.totalorder %s195, 0
    %s198 = sadd.s32 %s197, 1
    %s199 = scalar_select %p196, %s197, %s198
    %p202 = pneg %p196
    %p203 = scmp.eq.s32.totalorder %s19, 3
    %p204 = por %p202, %p203
    %p205 = scmp.ne.s32.totalorder %s197, %s200
    %p206 = scmp.eq.s32.totalorder %s19, 0
    %p207 = por %p205, %p206
    %p208 = scmp.ne.s32.totalorder %s197, %s200
    %p209 = scmp.eq.s32.totalorder %s24, 3
    %p210 = por %p208, %p209
    %p211 = scmp.ne.s32.totalorder %s200, %s201
    %p212 = scmp.eq.s32.totalorder %s24, 0
    %p213 = por %p211, %p212
    %p214 = scmp.ne.s32.totalorder %s200, %s201
    %p215 = scmp.eq.s32.totalorder %s25, 3
    %p216 = por %p214, %p215
    %p218 = scmp.ne.s32.totalorder %s201, %s217
    %p219 = scmp.eq.s32.totalorder %s25, 0
    %p220 = por %p218, %p219
    %s221 = ssub.s32 %s27, %s34
    %p222 = scmp.eq.s32.totalorder %s221, 0
    %s224 = sadd.s32 %s223, 1
    %s225 = scalar_select %p222, %s223, %s224
    %p228 = pneg %p222
    %p229 = scmp.eq.s32.totalorder %s19, 3
    %p230 = por %p228, %p229
    %p231 = scmp.ne.s32.totalorder %s223, %s226
    %p232 = scmp.eq.s32.totalorder %s19, 0
    %p233 = por %p231, %p232
    %p234 = scmp.ne.s32.totalorder %s223, %s226
    %p235 = scmp.eq.s32.totalorder %s24, 3
    %p236 = por %p234, %p235
    %p237 = scmp.ne.s32.totalorder %s226, %s227
    %p238 = scmp.eq.s32.totalorder %s24, 0
    %p239 = por %p237, %p238
    %p240 = scmp.ne.s32.totalorder %s226, %s227
    %p241 = scmp.eq.s32.totalorder %s25, 3
    %p242 = por %p240, %p241
    %p244 = scmp.ne.s32.totalorder %s227, %s243
    %p245 = scmp.eq.s32.totalorder %s25, 0
    %p246 = por %p244, %p245
    %s247 = ssub.s32 %s27, %s34
    %p248 = scmp.eq.s32.totalorder %s247, 0
    %s250 = sadd.s32 %s249, 1
    %s251 = scalar_select %p248, %s249, %s250
    %p254 = pneg %p248
    %p255 = scmp.eq.s32.totalorder %s19, 3
    %p256 = por %p254, %p255
    %p257 = scmp.ne.s32.totalorder %s249, %s252
    %p258 = scmp.eq.s32.totalorder %s19, 0
    %p259 = por %p257, %p258
    %p260 = scmp.ne.s32.totalorder %s249, %s252
    %p261 = scmp.eq.s32.totalorder %s24, 3
    %p262 = por %p260, %p261
    %p263 = scmp.ne.s32.totalorder %s252, %s253
    %p264 = scmp.eq.s32.totalorder %s24, 0
    %p265 = por %p263, %p264
    %p266 = scmp.ne.s32.totalorder %s252, %s253
    %p267 = scmp.eq.s32.totalorder %s25, 3
    %p268 = por %p266, %p267
    %p270 = scmp.ne.s32.totalorder %s253, %s269
    %p271 = scmp.eq.s32.totalorder %s25, 0
    %p272 = por %p270, %p271
    %s273 = ssub.s32 %s27, %s34
    %p274 = scmp.eq.s32.totalorder %s273, 0
    %s276 = sadd.s32 %s275, 1
    %s277 = scalar_select %p274, %s275, %s276
    %p280 = pneg %p274
    %p281 = scmp.eq.s32.totalorder %s19, 3
    %p282 = por %p280, %p281
    %p283 = scmp.ne.s32.totalorder %s275, %s278
    %p284 = scmp.eq.s32.totalorder %s19, 0
    %p285 = por %p283, %p284
    %p286 = scmp.ne.s32.totalorder %s275, %s278
    %p287 = scmp.eq.s32.totalorder %s24, 3
    %p288 = por %p286, %p287
    %p289 = scmp.ne.s32.totalorder %s278, %s279
    %p290 = scmp.eq.s32.totalorder %s24, 0
    %p291 = por %p289, %p290
    %p292 = scmp.ne.s32.totalorder %s278, %s279
    %p293 = scmp.eq.s32.totalorder %s25, 3
    %p294 = por %p292, %p293
    %p296 = scmp.ne.s32.totalorder %s279, %s295
    %p297 = scmp.eq.s32.totalorder %s25, 0
    %p298 = por %p296, %p297
    %s299 = ssub.s32 %s27, %s34
    %p300 = scmp.eq.s32.totalorder %s299, 0
    %s302 = sadd.s32 %s301, 1
    %s303 = scalar_select %p300, %s301, %s302
    %p306 = pneg %p300
    %p307 = scmp.eq.s32.totalorder %s19, 3
    %p308 = por %p306, %p307
    %p309 = scmp.ne.s32.totalorder %s301, %s304
    %p310 = scmp.eq.s32.totalorder %s19, 0
    %p311 = por %p309, %p310
    %p312 = scmp.ne.s32.totalorder %s301, %s304
    %p313 = scmp.eq.s32.totalorder %s24, 3
    %p314 = por %p312, %p313
    %p315 = scmp.ne.s32.totalorder %s304, %s305
    %p316 = scmp.eq.s32.totalorder %s24, 0
    %p317 = por %p315, %p316
    %p318 = scmp.ne.s32.totalorder %s304, %s305
    %p319 = scmp.eq.s32.totalorder %s25, 3
    %p320 = por %p318, %p319
    %p322 = scmp.ne.s32.totalorder %s305, %s321
    %p323 = scmp.eq.s32.totalorder %s25, 0
    %p324 = por %p322, %p323
    %s325 = ssub.s32 %s27, %s34
    %p326 = scmp.eq.s32.totalorder %s325, 0
    %s328 = sadd.s32 %s327, 1
    %s329 = scalar_select %p326, %s327, %s328
    %p332 = pneg %p326
    %p333 = scmp.eq.s32.totalorder %s19, 3
    %p334 = por %p332, %p333
    %p335 = scmp.ne.s32.totalorder %s327, %s330
    %p336 = scmp.eq.s32.totalorder %s19, 0
    %p337 = por %p335, %p336
    %p338 = scmp.ne.s32.totalorder %s327, %s330
    %p339 = scmp.eq.s32.totalorder %s24, 3
    %p340 = por %p338, %p339
    %p341 = scmp.ne.s32.totalorder %s330, %s331
    %p342 = scmp.eq.s32.totalorder %s24, 0
    %p343 = por %p341, %p342
    %p344 = scmp.ne.s32.totalorder %s330, %s331
    %p345 = scmp.eq.s32.totalorder %s25, 3
    %p346 = por %p344, %p345
    %p348 = scmp.ne.s32.totalorder %s331, %s347
    %p349 = scmp.eq.s32.totalorder %s25, 0
    %p350 = por %p348, %p349
    %s351 = ssub.s32 %s27, %s34
    %p352 = scmp.eq.s32.totalorder %s351, 0
    %s354 = sadd.s32 %s353, 1
    %s355 = scalar_select %p352, %s353, %s354
    %p358 = pneg %p352
    %p359 = scmp.eq.s32.totalorder %s19, 3
    %p360 = por %p358, %p359
    %p361 = scmp.ne.s32.totalorder %s353, %s356
    %p362 = scmp.eq.s32.totalorder %s19, 0
    %p363 = por %p361, %p362
    %p364 = scmp.ne.s32.totalorder %s353, %s356
    %p365 = scmp.eq.s32.totalorder %s24, 3
    %p366 = por %p364, %p365
    %p367 = scmp.ne.s32.totalorder %s356, %s357
    %p368 = scmp.eq.s32.totalorder %s24, 0
    %p369 = por %p367, %p368
    %p370 = scmp.ne.s32.totalorder %s356, %s357
    %p371 = scmp.eq.s32.totalorder %s25, 3
    %p372 = por %p370, %p371
    %p374 = scmp.ne.s32.totalorder %s357, %s373
    %p375 = scmp.eq.s32.totalorder %s25, 0
    %p376 = por %p374, %p375
    %s377 = ssub.s32 %s26, %s38
    %p378 = scmp.eq.s32.totalorder %s377, 0
    %s380 = sadd.s32 %s379, 1
    %s381 = scalar_select %p378, %s379, %s380
    %p384 = pneg %p378
    %p385 = scmp.eq.s32.totalorder %s19, 3
    %p386 = por %p384, %p385
    %p387 = scmp.ne.s32.totalorder %s379, %s382
    %p388 = scmp.eq.s32.totalorder %s19, 0
    %p389 = por %p387, %p388
    %p390 = scmp.ne.s32.totalorder %s379, %s382
    %p391 = scmp.eq.s32.totalorder %s24, 3
    %p392 = por %p390, %p391
    %p393 = scmp.ne.s32.totalorder %s382, %s383
    %p394 = scmp.eq.s32.totalorder %s24, 0
    %p395 = por %p393, %p394
    %p396 = scmp.ne.s32.totalorder %s382, %s383
    %p397 = scmp.eq.s32.totalorder %s25, 3
    %p398 = por %p396, %p397
    %p400 = scmp.ne.s32.totalorder %s383, %s399
    %p401 = scmp.eq.s32.totalorder %s25, 0
    %p402 = por %p400, %p401
    %p403 = scmp.le.s32.totalorder 1, %s19
    %p404 = scmp.lt.s32.totalorder %s19, 5
    %p405 = pnand %p403, %p404
    %p406 = pneg %p405
    // Predicated region
    $region9: #{dino_peft_forward.3} parent=5 // pred_check
      _
    $region10: #{dino_peft_forward.3} parent=5 // pred_check_branch
      %408 = sbr.rel (%p405) target = $region12
    $region11: #{dino_peft_forward.3} parent=5 // pred_region
      %s409 = ssub.s32 %s19, 1
    $region12: #{dino_peft_forward.3} parent=5 // pred_fallthru
      _
    %p410 = scmp.lt.s32.totalorder %s19, 4
    // Predicated region
    $region13: #{dino_peft_forward.3} parent=5 // pred_check
      %p411 = pneg %p410
    $region14: #{dino_peft_forward.3} parent=5 // pred_check_branch
      %413 = sbr.rel (%p411) target = $region16
    $region15: #{dino_peft_forward.3} parent=5 // pred_region
      // Predicated region
      $region17: #{dino_peft_forward.3} parent=15 // pred_check
        %p414 = pneg %p51
      $region18: #{dino_peft_forward.3} parent=15 // pred_check_branch
        %416 = sbr.rel (%p414) target = $region20
      $region19: #{dino_peft_forward.3} parent=15 // pred_region
        %p417 = scmp.lt.s32.totalorder %s26, 1
        %s418 = scalar_select %p417, %s26, 1
        %s419 = smul.addr %s418, 8
        %s420 = scalar_lea.vmem %s0, %s419
      $region20: #{dino_peft_forward.3} parent=15 // pred_fallthru
        _
      // Predicated region
      $region21: #{dino_peft_forward.3} parent=15 // pred_check
        %p421 = pneg %p77
      $region22: #{dino_peft_forward.3} parent=15 // pred_check_branch
        %423 = sbr.rel (%p421) target = $region24
      $region23: #{dino_peft_forward.3} parent=15 // pred_region
        %p424 = scmp.lt.s32.totalorder %s27, 1
        %s425 = scalar_select %p424, %s27, 1
        %s426 = scalar_lea.vmem %s1, %s425
      $region24: #{dino_peft_forward.3} parent=15 // pred_fallthru
        _
      // Predicated region
      $region25: #{dino_peft_forward.3} parent=15 // pred_check
        %p427 = pneg %p103
      $region26: #{dino_peft_forward.3} parent=15 // pred_check_branch
        %429 = sbr.rel (%p427) target = $region28
      $region27: #{dino_peft_forward.3} parent=15 // pred_region
        %p430 = scmp.lt.s32.totalorder %s27, 1
        %s431 = scalar_select %p430, %s27, 1
        %s432 = scalar_lea.vmem %s2, %s431
      $region28: #{dino_peft_forward.3} parent=15 // pred_fallthru
        _
      // Predicated region
      $region29: #{dino_peft_forward.3} parent=15 // pred_check
        %p433 = pneg %p129
      $region30: #{dino_peft_forward.3} parent=15 // pred_check_branch
        %435 = sbr.rel (%p433) target = $region32
      $region31: #{dino_peft_forward.3} parent=15 // pred_region
        %p436 = scmp.lt.s32.totalorder %s27, 1
        %s437 = scalar_select %p436, %s27, 1
        %s438 = smul.addr %s437, 4
        %s439 = smul.addr %s438, 4
        %s440 = scalar_lea.vmem %s3, %s439
      $region32: #{dino_peft_forward.3} parent=15 // pred_fallthru
        _
      // Predicated region
      $region33: #{dino_peft_forward.3} parent=15 // pred_check
        %p441 = pneg %p155
      $region34: #{dino_peft_forward.3} parent=15 // pred_check_branch
        %443 = sbr.rel (%p441) target = $region36
      $region35: #{dino_peft_forward.3} parent=15 // pred_region
        %p444 = scmp.lt.s32.totalorder %s27, 1
        %s445 = scalar_select %p444, %s27, 1
        %s446 = scalar_lea.vmem %s4, %s445
      $region36: #{dino_peft_forward.3} parent=15 // pred_fallthru
        _
      // Predicated region
      $region37: #{dino_peft_forward.3} parent=15 // pred_check
        %p447 = pneg %p181
      $region38: #{dino_peft_forward.3} parent=15 // pred_check_branch
        %449 = sbr.rel (%p447) target = $region40
      $region39: #{dino_peft_forward.3} parent=15 // pred_region
        %p450 = scmp.lt.s32.totalorder %s27, 1
        %s451 = scalar_select %p450, %s27, 1
        %s452 = smul.addr %s451, 4
        %s453 = smul.addr %s452, 4
        %s454 = scalar_lea.vmem %s5, %s453
      $region40: #{dino_peft_forward.3} parent=15 // pred_fallthru
        _
      // Predicated region
      $region41: #{dino_peft_forward.3} parent=15 // pred_check
        %p455 = pneg %p207
      $region42: #{dino_peft_forward.3} parent=15 // pred_check_branch
        %457 = sbr.rel (%p455) target = $region44
      $region43: #{dino_peft_forward.3} parent=15 // pred_region
        %p458 = scmp.lt.s32.totalorder %s27, 1
        %s459 = scalar_select %p458, %s27, 1
        %s460 = scalar_lea.vmem %s6, %s459
      $region44: #{dino_peft_forward.3} parent=15 // pred_fallthru
        _
      // Predicated region
      $region45: #{dino_peft_forward.3} parent=15 // pred_check
        %p461 = pneg %p233
      $region46: #{dino_peft_forward.3} parent=15 // pred_check_branch
        %463 = sbr.rel (%p461) target = $region48
      $region47: #{dino_peft_forward.3} parent=15 // pred_region
        %p464 = scmp.lt.s32.totalorder %s27, 1
        %s465 = scalar_select %p464, %s27, 1
        %s466 = scalar_lea.vmem %s7, %s465
      $region48: #{dino_peft_forward.3} parent=15 // pred_fallthru
        _
      // Predicated region
      $region49: #{dino_peft_forward.3} parent=15 // pred_check
        %p467 = pneg %p259
      $region50: #{dino_peft_forward.3} parent=15 // pred_check_branch
        %469 = sbr.rel (%p467) target = $region52
      $region51: #{dino_peft_forward.3} parent=15 // pred_region
        %p470 = scmp.lt.s32.totalorder %s27, 1
        %s471 = scalar_select %p470, %s27, 1
        %s472 = scalar_lea.vmem %s8, %s471
      $region52: #{dino_peft_forward.3} parent=15 // pred_fallthru
        _
      // Predicated region
      $region53: #{dino_peft_forward.3} parent=15 // pred_check
        %p473 = pneg %p285
      $region54: #{dino_peft_forward.3} parent=15 // pred_check_branch
        %475 = sbr.rel (%p473) target = $region56
      $region55: #{dino_peft_forward.3} parent=15 // pred_region
        %p476 = scmp.lt.s32.totalorder %s27, 1
        %s477 = scalar_select %p476, %s27, 1
        %s478 = smul.addr %s477, 4
        %s479 = smul.addr %s478, 4
        %s480 = scalar_lea.vmem %s9, %s479
      $region56: #{dino_peft_forward.3} parent=15 // pred_fallthru
        _
      // Predicated region
      $region57: #{dino_peft_forward.3} parent=15 // pred_check
        %p481 = pneg %p311
      $region58: #{dino_peft_forward.3} parent=15 // pred_check_branch
        %483 = sbr.rel (%p481) target = $region60
      $region59: #{dino_peft_forward.3} parent=15 // pred_region
        %p484 = scmp.lt.s32.totalorder %s27, 1
        %s485 = scalar_select %p484, %s27, 1
        %s486 = scalar_lea.vmem %s10, %s485
      $region60: #{dino_peft_forward.3} parent=15 // pred_fallthru
        _
      // Predicated region
      $region61: #{dino_peft_forward.3} parent=15 // pred_check
        %p487 = pneg %p337
      $region62: #{dino_peft_forward.3} parent=15 // pred_check_branch
        %489 = sbr.rel (%p487) target = $region64
      $region63: #{dino_peft_forward.3} parent=15 // pred_region
        %p490 = scmp.lt.s32.totalorder %s27, 1
        %s491 = scalar_select %p490, %s27, 1
        %s492 = smul.addr %s491, 16
        %s493 = smul.addr %s492, 4
        %s494 = scalar_lea.vmem %s11, %s493
      $region64: #{dino_peft_forward.3} parent=15 // pred_fallthru
        _
      // Predicated region
      $region65: #{dino_peft_forward.3} parent=15 // pred_check
        %p495 = pneg %p363
      $region66: #{dino_peft_forward.3} parent=15 // pred_check_branch
        %497 = sbr.rel (%p495) target = $region68
      $region67: #{dino_peft_forward.3} parent=15 // pred_region
        %p498 = scmp.lt.s32.totalorder %s27, 1
        %s499 = scalar_select %p498, %s27, 1
        %s500 = scalar_lea.vmem %s12, %s499
      $region68: #{dino_peft_forward.3} parent=15 // pred_fallthru
        _
    $region16: #{dino_peft_forward.3} parent=5 // pred_fallthru
      _
    %p501 = scmp.le.s32.totalorder 1, %s19
    %p502 = scmp.lt.s32.totalorder %s19, 5
    %p503 = pnand %p501, %p502
    %p504 = pneg %p503
    // Predicated region
    $region69: #{dino_peft_forward.3} parent=5 // pred_check
      _
    $region70: #{dino_peft_forward.3} parent=5 // pred_check_branch
      %506 = sbr.rel (%p503) target = $region72
    $region71: #{dino_peft_forward.3} parent=5 // pred_region
      %s507 = ssub.s32 %s19, 1
      %p508 = scmp.lt.s32.totalorder %s28, 1
      %s509 = scalar_select %p508, %s28, 1
      %s510 = smul.addr %s509, 8
      %s511 = scalar_lea.vmem %s0, %s510
      %p512 = pneg %p57
      %p513 = pneg %p54
      %p514 = scmp.lt.s32.totalorder %s29, 1
      %s515 = scalar_select %p514, %s29, 1
      %s516 = scalar_lea.vmem %s1, %s515
      %p517 = pneg %p83
      %p518 = pneg %p80
      %p519 = scmp.lt.s32.totalorder %s29, 1
      %s520 = scalar_select %p519, %s29, 1
      %s521 = scalar_lea.vmem %s2, %s520
      %p522 = pneg %p109
      %p523 = pneg %p106
      %p524 = scmp.lt.s32.totalorder %s29, 1
      %s525 = scalar_select %p524, %s29, 1
      %s526 = smul.addr %s525, 4
      %s527 = smul.addr %s526, 4
      %s528 = scalar_lea.vmem %s3, %s527
      %p529 = pneg %p135
      %p530 = pneg %p132
      %p531 = scmp.lt.s32.totalorder %s29, 1
      %s532 = scalar_select %p531, %s29, 1
      %s533 = scalar_lea.vmem %s4, %s532
      %p534 = pneg %p161
      %p535 = pneg %p158
      %p536 = scmp.lt.s32.totalorder %s29, 1
      %s537 = scalar_select %p536, %s29, 1
      %s538 = smul.addr %s537, 4
      %s539 = smul.addr %s538, 4
      %s540 = scalar_lea.vmem %s5, %s539
      %p541 = pneg %p187
      %p542 = pneg %p184
      %p543 = scmp.lt.s32.totalorder %s29, 1
      %s544 = scalar_select %p543, %s29, 1
      %s545 = scalar_lea.vmem %s6, %s544
      %p546 = pneg %p213
      %p547 = pneg %p210
      %p548 = scmp.lt.s32.totalorder %s29, 1
      %s549 = scalar_select %p548, %s29, 1
      %s550 = scalar_lea.vmem %s7, %s549
      %p551 = pneg %p239
      %p552 = pneg %p236
      %p553 = scmp.lt.s32.totalorder %s29, 1
      %s554 = scalar_select %p553, %s29, 1
      %s555 = scalar_lea.vmem %s8, %s554
      %p556 = pneg %p265
      %p557 = pneg %p262
      %p558 = scmp.lt.s32.totalorder %s29, 1
      %s559 = scalar_select %p558, %s29, 1
      %s560 = smul.addr %s559, 4
      %s561 = smul.addr %s560, 4
      %s562 = scalar_lea.vmem %s9, %s561
      %p563 = pneg %p291
      %p564 = pneg %p288
      %p565 = scmp.lt.s32.totalorder %s29, 1
      %s566 = scalar_select %p565, %s29, 1
      %s567 = scalar_lea.vmem %s10, %s566
      %p568 = pneg %p317
      %p569 = pneg %p314
      %p570 = scmp.lt.s32.totalorder %s29, 1
      %s571 = scalar_select %p570, %s29, 1
      %s572 = smul.addr %s571, 16
      %s573 = smul.addr %s572, 4
      %s574 = scalar_lea.vmem %s11, %s573
      %p575 = pneg %p343
      %p576 = pneg %p340
      %p577 = scmp.lt.s32.totalorder %s29, 1
      %s578 = scalar_select %p577, %s29, 1
      %s579 = scalar_lea.vmem %s12, %s578
      %p580 = pneg %p369
      %p581 = pneg %p366
      %p582 = pneg %p395
      %p583 = pneg %p392
      %p584 = scmp.lt.s32.totalorder %s28, 1
      %s585 = scalar_select %p584, %s28, 1
      %s586 = smul.addr %s585, 8
      %s587 = scalar_lea.vmem %s13, %s586
      %p588 = scmp.lt.s32.totalorder %s28, 1
      %s589 = scalar_select %p588, %s28, 1
      %s590 = smul.addr %s589, 8
      %s591 = scalar_lea.vmem %s0, %s590
      %p592 = scmp.lt.s32.totalorder %s29, 1
      %s593 = scalar_select %p592, %s29, 1
      %s594 = scalar_lea.vmem %s1, %s593
      %p595 = scmp.lt.s32.totalorder %s29, 1
      %s596 = scalar_select %p595, %s29, 1
      %s597 = scalar_lea.vmem %s2, %s596
      %p598 = scmp.lt.s32.totalorder %s29, 1
      %s599 = scalar_select %p598, %s29, 1
      %s600 = smul.addr %s599, 4
      %s601 = smul.addr %s600, 4
      %s602 = scalar_lea.vmem %s3, %s601
      %p603 = scmp.lt.s32.totalorder %s29, 1
      %s604 = scalar_select %p603, %s29, 1
      %s605 = scalar_lea.vmem %s4, %s604
      %p606 = scmp.lt.s32.totalorder %s29, 1
      %s607 = scalar_select %p606, %s29, 1
      %s608 = smul.addr %s607, 4
      %s609 = smul.addr %s608, 4
      %s610 = scalar_lea.vmem %s5, %s609
      %p611 = scmp.lt.s32.totalorder %s29, 1
      %s612 = scalar_select %p611, %s29, 1
      %s613 = scalar_lea.vmem %s6, %s612
      %p614 = scmp.lt.s32.totalorder %s29, 1
      %s615 = scalar_select %p614, %s29, 1
      %s616 = scalar_lea.vmem %s7, %s615
      %p617 = scmp.lt.s32.totalorder %s29, 1
      %s618 = scalar_select %p617, %s29, 1
      %s619 = scalar_lea.vmem %s8, %s618
      %p620 = scmp.lt.s32.totalorder %s29, 1
      %s621 = scalar_select %p620, %s29, 1
      %s622 = smul.addr %s621, 4
      %s623 = smul.addr %s622, 4
      %s624 = scalar_lea.vmem %s9, %s623
      %p625 = scmp.lt.s32.totalorder %s29, 1
      %s626 = scalar_select %p625, %s29, 1
      %s627 = scalar_lea.vmem %s10, %s626
      %p628 = scmp.lt.s32.totalorder %s29, 1
      %s629 = scalar_select %p628, %s29, 1
      %s630 = smul.addr %s629, 16
      %s631 = smul.addr %s630, 4
      %s632 = scalar_lea.vmem %s11, %s631
      %p633 = scmp.lt.s32.totalorder %s29, 1
      %s634 = scalar_select %p633, %s29, 1
      %s635 = scalar_lea.vmem %s12, %s634
      %p636 = scmp.lt.s32.totalorder %s28, 1
      %s637 = scalar_select %p636, %s28, 1
      %s638 = smul.addr %s637, 8
      %s639 = scalar_lea.vmem %s13, %s638
      %p641 = scmp.eq.s32.totalorder %s29, 0
      // Predicated region
      $region73: #{dino_peft_forward.3} parent=71 // pred_check
        %p642 = pneg %p641
      $region74: #{dino_peft_forward.3} parent=71 // pred_check_branch
        %644 = sbr.rel (%p642) target = $region76
      $region75: #{dino_peft_forward.3} parent=71 // pred_region
        %v645 = vld [vmem:[%s591] sm:$0x1f]
        %vm646 = vcmask 258048
        %647 = vst.msk [vmem:[%s639] sm:$0x1f] %vm646, %v645
      $region76: #{dino_peft_forward.3} parent=71 // pred_fallthru
        _
      %v648 = vld [vmem:[%s639] sm:$0x1f]
      %v649 = vld [vmem:[%s594] sm:$0x1]
      %v650 = vld [vmem:[%s597] sm:$0x1]
      %vm651 = vcmask 258048
      %v652 = vsel %vm651, %v648, 0.0
      %653 = vadd.xlane.f32.xlu0 %v652
      %v654 = vpop.xlane.xlu0 %653
      %v655 = vrcp.pop 32.0
      %v656 = vmul.f32 32.0, %v655
      %v657 = vsub.f32 1.0, %v656
      %v658 = vmul.f32 %v655, %v657
      %v659 = vadd.f32 %v655, %v658
      %vm660 = vweird.f32 %v655
      %v661 = vsel %vm660, %v655, %v659
      %v662 = vmul.f32 %v654, %v661
      %v663 = vsub.f32 %v648, %v662
      %v664 = vmul.f32 %v663, %v663
      %v665 = vsel %vm651, %v664, 0.0
      %666 = vadd.xlane.f32.xlu0 %v665
      %v667 = vpop.xlane.xlu0 %666
      %v668 = vmul.f32 %v667, %v661
      %v669 = vadd.f32 %v668, 1e-06
      %v670 = vrsqrt.pop %v669
      %v671 = vmul.f32 %v670, %v669
      %v672 = vmul.f32 %v671, %v670
      %v673 = vmul.f32 0.5, %v672
      %v674 = vsub.f32 1.5, %v673
      %v675 = vmul.f32 %v670, %v674
      %vm676 = vweird.f32 %v669
      %vm677 = vweird.f32 %v670
      %vm678 = vmor %vm676, %vm677
      %v679 = vsel %vm678, %v670, %v675
      %v680 = vmul.f32 %v663, %v679
      %v682 = vperm.slane %v649, 0
      %v684 = vmul.f32 %v680, %v682
      %v686 = vperm.slane %v650, 0
      %v688 = vadd.f32 %v684, %v686
      %v689 = vld [vmem:[%s602] sm:$0xf]
      %v690 = vld [vmem:[%s602 + $0x4] sm:$0xf]
      %v691 = vld [vmem:[%s602 + $0x8] sm:$0xf]
      %v692 = vld [vmem:[%s602 + $0xc] sm:$0xf]
      %v693 = vpack.c.bf16 %v688, %v688
      %v694 = vld [vmem:[%s605] sm:$0x1]
      %v696 = vperm.slane %v694, 0
      %v702 = vunpack.c.l.b16 %v689
      %v703 = vunpack.c.l.b16 %v690
      %v704 = vunpack.c.l.b16 %v691
      %v705 = vunpack.c.l.b16 %v692
      %v706 = vpack.c.b16 %v703, %v702
      %v707 = vpack.c.b16 %v705, %v704
      %vm710 = vcmask 261120
      %v712 = vsel %vm710, %v693, 0
      %714 = vmatpush.bf16.msra.mxu0 0
      %715 = vmatpush.bf16.msra.mxu0 0
      %716 = vmatpush.bf16.msra.mxu0 0
      %717 = vmatpush.bf16.msra.mxu0 0
      %718 = vmatpush.bf16.msra.mxu0 0
      %719 = vmatpush.bf16.msra.mxu0 0
      %720 = vmatpush.bf16.msra.mxu0 %v707
      %721 = vmatpush.bf16.msra.mxu0 %v706
      %722 = vmatmul.bf16.gmra.mxu0 %v712
      %v723 = vpop.f32.mrf.mxu0
      %v724 = vadd.f32 %v696, %v723
      %v725 = vpop.f32.mrf.mxu0
      %726 = vdwg.mxu0
      %v727 = vld [vmem:[%s610] sm:$0xf]
      %v728 = vld [vmem:[%s610 + $0x4] sm:$0xf]
      %v729 = vld [vmem:[%s610 + $0x8] sm:$0xf]
      %v730 = vld [vmem:[%s610 + $0xc] sm:$0xf]
      %v731 = vpack.c.bf16 %v724, %v724
      %733 = vrot.lane.b32.xlu0 %v731, 96
      %v734 = vpop.permute.xlu0 %733
      %vm735 = vcmask 64512
      %v737 = vsel %vm735, %v731, 0
      %v740 = vsel %vm735, %v734, 0
      %742 = vmatpush.bf16.xpose.msra.mxu0 0
      %743 = vmatpush.bf16.xpose.msra.mxu0 0
      %744 = vmatpush.bf16.xpose.msra.mxu0 0
      %745 = vmatpush.bf16.xpose.msra.mxu0 0
      %746 = vmatpush.bf16.xpose.msra.mxu0 0
      %747 = vmatpush.bf16.xpose.msra.mxu0 0
      %748 = vmatpush.bf16.xpose.msra.mxu0 0
      %749 = vmatpush.bf16.xpose.msra.mxu0 %v740
      %750 = vmatmul.bf16.gmra.mxu0 %v737
      %v751 = vpop.f32.mrf.mxu0
      %v752 = vadd.f32 0.0, %v751
      %v753 = vpop.f32.mrf.mxu0
      %754 = vdwg.mxu0
      %vm755 = vcmask 36864
      %v756 = vsel %vm755, %v752, -inf
      %757 = vmax.xlane.f32.xlu0 %v756
      %v758 = vpop.xlane.xlu0 %757
      %v759 = vsub.f32 %v752, %v758
      %v760 = vmul.f32 %v759, 1.442695
      %v761 = vpow.pop %v760
      %v762 = vsel %vm755, %v761, 0.0
      %763 = vadd.xlane.f32.xlu0 %v762
      %v764 = vpop.xlane.xlu0 %763
      %v765 = vrcp.pop %v764
      %v766 = vmul.f32 %v761, %v765
      %v767 = vpack.c.bf16 %v766, %v766
      %768 = vrot.lane.b32.xlu0 %v731, 64
      %v769 = vpop.permute.xlu0 %768
      %vm770 = vcmask 39936
      %v772 = vsel %vm770, %v767, 0
      %vm774 = vcmask 1041408
      %vm775 = vcmask 1042432
      %v776 = vsel %vm774, 4294967295, 65535
      %v777 = vsel %vm775, %v776, 0
      %v779 = vand.u32 %v769, %v777
      %781 = vmatpush.bf16.msra.mxu0 0
      %782 = vmatpush.bf16.msra.mxu0 0
      %783 = vmatpush.bf16.msra.mxu0 0
      %784 = vmatpush.bf16.msra.mxu0 0
      %785 = vmatpush.bf16.msra.mxu0 0
      %786 = vmatpush.bf16.msra.mxu0 0
      %787 = vmatpush.bf16.msra.mxu0 0
      %788 = vmatpush.bf16.msra.mxu0 %v779
      %789 = vmatmul.bf16.gmra.mxu0 %v772
      %v790 = vpop.f32.mrf.mxu0
      %v791 = vadd.f32 0.0, %v790
      %v792 = vpop.f32.mrf.mxu0
      %793 = vdwg.mxu0
      %v794 = vpack.c.bf16 %v791, %v791
      %795 = vrot.lane.b32.xlu0 %v731, 120
      %v796 = vpop.permute.xlu0 %795
      %797 = vrot.lane.b32.xlu0 %v731, 88
      %v798 = vpop.permute.xlu0 %797
      %v800 = vsel %vm735, %v796, 0
      %v803 = vsel %vm735, %v798, 0
      %805 = vmatpush.bf16.xpose.msra.mxu0 0
      %806 = vmatpush.bf16.xpose.msra.mxu0 0
      %807 = vmatpush.bf16.xpose.msra.mxu0 0
      %808 = vmatpush.bf16.xpose.msra.mxu0 0
      %809 = vmatpush.bf16.xpose.msra.mxu0 0
      %810 = vmatpush.bf16.xpose.msra.mxu0 0
      %811 = vmatpush.bf16.xpose.msra.mxu0 0
      %812 = vmatpush.bf16.xpose.msra.mxu0 %v803
      %813 = vmatmul.bf16.gmra.mxu0 %v800
      %v814 = vpop.f32.mrf.mxu0
      %v815 = vadd.f32 0.0, %v814
      %v816 = vpop.f32.mrf.mxu0
      %817 = vdwg.mxu0
      %v818 = vsel %vm755, %v815, -inf
      %819 = vmax.xlane.f32.xlu0 %v818
      %v820 = vpop.xlane.xlu0 %819
      %v821 = vsub.f32 %v815, %v820
      %v822 = vmul.f32 %v821, 1.442695
      %v823 = vpow.pop %v822
      %v824 = vsel %vm755, %v823, 0.0
      %825 = vadd.xlane.f32.xlu0 %v824
      %v826 = vpop.xlane.xlu0 %825
      %v827 = vrcp.pop %v826
      %v828 = vmul.f32 %v823, %v827
      %v829 = vpack.c.bf16 %v828, %v828
      %830 = vrot.lane.b32.xlu0 %v731, 56
      %v831 = vpop.permute.xlu0 %830
      %v833 = vsel %vm770, %v829, 0
      %v836 = vand.u32 %v831, %v777
      %838 = vmatpush.bf16.msra.mxu0 0
      %839 = vmatpush.bf16.msra.mxu0 0
      %840 = vmatpush.bf16.msra.mxu0 0
      %841 = vmatpush.bf16.msra.mxu0 0
      %842 = vmatpush.bf16.msra.mxu0 0
      %843 = vmatpush.bf16.msra.mxu0 0
      %844 = vmatpush.bf16.msra.mxu0 0
      %845 = vmatpush.bf16.msra.mxu0 %v836
      %846 = vmatmul.bf16.gmra.mxu0 %v833
      %v847 = vpop.f32.mrf.mxu0
      %v848 = vadd.f32 0.0, %v847
      %v849 = vpop.f32.mrf.mxu0
      %850 = vdwg.mxu0
      %v851 = vpack.c.bf16 %v848, %v848
      %v853 = vsel %vm735, %v851, 0
      %vm855 = vcmask 1043456
      %v857 = vsel %vm855, %v728, 0
      %859 = vmatpush.bf16.msra.mxu0 0
      %860 = vmatpush.bf16.msra.mxu0 0
      %861 = vmatpush.bf16.msra.mxu0 0
      %862 = vmatpush.bf16.msra.mxu0 0
      %863 = vmatpush.bf16.msra.mxu0 0
      %864 = vmatpush.bf16.msra.mxu0 0
      %865 = vmatpush.bf16.msra.mxu0 0
      %866 = vmatpush.bf16.msra.mxu0 %v857
      %867 = vmatmul.bf16.gmra.mxu0 %v853
      %v868 = vpop.f32.mrf.mxu0
      %v869 = vadd.f32 0.0, %v868
      %v870 = vpop.f32.mrf.mxu0
      %871 = vdwg.mxu0
      %v873 = vsel %vm735, %v794, 0
      %v876 = vsel %vm855, %v727, 0
      %878 = vmatpush.bf16.msra.mxu0 0
      %879 = vmatpush.bf16.msra.mxu0 0
      %880 = vmatpush.bf16.msra.mxu0 0
      %881 = vmatpush.bf16.msra.mxu0 0
      %882 = vmatpush.bf16.msra.mxu0 0
      %883 = vmatpush.bf16.msra.mxu0 0
      %884 = vmatpush.bf16.msra.mxu0 0
      %885 = vmatpush.bf16.msra.mxu0 %v876
      %886 = vmatmul.bf16.gmra.mxu0 %v873
      %v887 = vpop.f32.mrf.mxu0
      %v888 = vadd.f32 %v869, %v887
      %v889 = vpop.f32.mrf.mxu0
      %890 = vdwg.mxu0
      %891 = vrot.lane.b32.xlu0 %v731, 112
      %v892 = vpop.permute.xlu0 %891
      %893 = vrot.lane.b32.xlu0 %v731, 80
      %v894 = vpop.permute.xlu0 %893
      %v896 = vsel %vm735, %v892, 0
      %v899 = vsel %vm735, %v894, 0
      %901 = vmatpush.bf16.xpose.msra.mxu0 0
      %902 = vmatpush.bf16.xpose.msra.mxu0 0
      %903 = vmatpush.bf16.xpose.msra.mxu0 0
      %904 = vmatpush.bf16.xpose.msra.mxu0 0
      %905 = vmatpush.bf16.xpose.msra.mxu0 0
      %906 = vmatpush.bf16.xpose.msra.mxu0 0
      %907 = vmatpush.bf16.xpose.msra.mxu0 0
      %908 = vmatpush.bf16.xpose.msra.mxu0 %v899
      %909 = vmatmul.bf16.gmra.mxu0 %v896
      %v910 = vpop.f32.mrf.mxu0
      %v911 = vadd.f32 0.0, %v910
      %v912 = vpop.f32.mrf.mxu0
      %913 = vdwg.mxu0
      %v914 = vsel %vm755, %v911, -inf
      %915 = vmax.xlane.f32.xlu0 %v914
      %v916 = vpop.xlane.xlu0 %915
      %v917 = vsub.f32 %v911, %v916
      %v918 = vmul.f32 %v917, 1.442695
      %v919 = vpow.pop %v918
      %v920 = vsel %vm755, %v919, 0.0
      %921 = vadd.xlane.f32.xlu0 %v920
      %v922 = vpop.xlane.xlu0 %921
      %v923 = vrcp.pop %v922
      %v924 = vmul.f32 %v919, %v923
      %v925 = vpack.c.bf16 %v924, %v924
      %926 = vrot.lane.b32.xlu0 %v731, 48
      %v927 = vpop.permute.xlu0 %926
      %v929 = vsel %vm770, %v925, 0
      %v932 = vand.u32 %v927, %v777
      %934 = vmatpush.bf16.msra.mxu0 0
      %935 = vmatpush.bf16.msra.mxu0 0
      %936 = vmatpush.bf16.msra.mxu0 0
      %937 = vmatpush.bf16.msra.mxu0 0
      %938 = vmatpush.bf16.msra.mxu0 0
      %939 = vmatpush.bf16.msra.mxu0 0
      %940 = vmatpush.bf16.msra.mxu0 0
      %941 = vmatpush.bf16.msra.mxu0 %v932
      %942 = vmatmul.bf16.gmra.mxu0 %v929
      %v943 = vpop.f32.mrf.mxu0
      %v944 = vadd.f32 0.0, %v943
      %v945 = vpop.f32.mrf.mxu0
      %946 = vdwg.mxu0
      %v947 = vpack.c.bf16 %v944, %v944
      %v949 = vsel %vm735, %v947, 0
      %v952 = vsel %vm855, %v729, 0
      %954 = vmatpush.bf16.msra.mxu0 0
      %955 = vmatpush.bf16.msra.mxu0 0
      %956 = vmatpush.bf16.msra.mxu0 0
      %957 = vmatpush.bf16.msra.mxu0 0
      %958 = vmatpush.bf16.msra.mxu0 0
      %959 = vmatpush.bf16.msra.mxu0 0
      %960 = vmatpush.bf16.msra.mxu0 0
      %961 = vmatpush.bf16.msra.mxu0 %v952
      %962 = vmatmul.bf16.gmra.mxu0 %v949
      %v963 = vpop.f32.mrf.mxu0
      %v964 = vadd.f32 0.0, %v963
      %v965 = vpop.f32.mrf.mxu0
      %966 = vdwg.mxu0
      %v967 = vadd.f32 %v888, %v964
      %968 = vrot.lane.b32.xlu0 %v731, 104
      %v969 = vpop.permute.xlu0 %968
      %970 = vrot.lane.b32.xlu0 %v731, 72
      %v971 = vpop.permute.xlu0 %970
      %v973 = vsel %vm735, %v969, 0
      %v976 = vsel %vm735, %v971, 0
      %978 = vmatpush.bf16.xpose.msra.mxu0 0
      %979 = vmatpush.bf16.xpose.msra.mxu0 0
      %980 = vmatpush.bf16.xpose.msra.mxu0 0
      %981 = vmatpush.bf16.xpose.msra.mxu0 0
      %982 = vmatpush.bf16.xpose.msra.mxu0 0
      %983 = vmatpush.bf16.xpose.msra.mxu0 0
      %984 = vmatpush.bf16.xpose.msra.mxu0 0
      %985 = vmatpush.bf16.xpose.msra.mxu0 %v976
      %986 = vmatmul.bf16.gmra.mxu0 %v973
      %v987 = vpop.f32.mrf.mxu0
      %v988 = vadd.f32 0.0, %v987
      %v989 = vpop.f32.mrf.mxu0
      %990 = vdwg.mxu0
      %v991 = vsel %vm755, %v988, -inf
      %992 = vmax.xlane.f32.xlu0 %v991
      %v993 = vpop.xlane.xlu0 %992
      %v994 = vsub.f32 %v988, %v993
      %v995 = vmul.f32 %v994, 1.442695
      %v996 = vpow.pop %v995
      %v997 = vsel %vm755, %v996, 0.0
      %998 = vadd.xlane.f32.xlu0 %v997
      %v999 = vpop.xlane.xlu0 %998
      %v1000 = vrcp.pop %v999
      %v1001 = vmul.f32 %v996, %v1000
      %v1002 = vpack.c.bf16 %v1001, %v1001
      %1003 = vrot.lane.b32.xlu0 %v731, 40
      %v1004 = vpop.permute.xlu0 %1003
      %v1006 = vsel %vm770, %v1002, 0
      %v1009 = vand.u32 %v1004, %v777
      %1011 = vmatpush.bf16.msra.mxu0 0
      %1012 = vmatpush.bf16.msra.mxu0 0
      %1013 = vmatpush.bf16.msra.mxu0 0
      %1014 = vmatpush.bf16.msra.mxu0 0
      %1015 = vmatpush.bf16.msra.mxu0 0
      %1016 = vmatpush.bf16.msra.mxu0 0
      %1017 = vmatpush.bf16.msra.mxu0 0
      %1018 = vmatpush.bf16.msra.mxu0 %v1009
      %1019 = vmatmul.bf16.gmra.mxu0 %v1006
      %v1020 = vpop.f32.mrf.mxu0
      %v1021 = vadd.f32 0.0, %v1020
      %v1022 = vpop.f32.mrf.mxu0
      %1023 = vdwg.mxu0
      %v1024 = vpack.c.bf16 %v1021, %v1021
      %v1026 = vsel %vm735, %v1024, 0
      %v1029 = vsel %vm855, %v730, 0
      %1031 = vmatpush.bf16.msra.mxu0 0
      %1032 = vmatpush.bf16.msra.mxu0 0
      %1033 = vmatpush.bf16.msra.mxu0 0
      %1034 = vmatpush.bf16.msra.mxu0 0
      %1035 = vmatpush.bf16.msra.mxu0 0
      %1036 = vmatpush.bf16.msra.mxu0 0
      %1037 = vmatpush.bf16.msra.mxu0 0
      %1038 = vmatpush.bf16.msra.mxu0 %v1029
      %1039 = vmatmul.bf16.gmra.mxu0 %v1026
      %v1040 = vpop.f32.mrf.mxu0
      %v1041 = vadd.f32 0.0, %v1040
      %v1042 = vpop.f32.mrf.mxu0
      %1043 = vdwg.mxu0
      %v1044 = vadd.f32 %v967, %v1041
      %v1045 = vadd.f32 %v648, %v1044
      %v1046 = vld [vmem:[%s613] sm:$0x1]
      %v1048 = vperm.slane %v1046, 0
      %v1050 = vadd.f32 %v1045, %v1048
      %v1051 = vld [vmem:[%s616] sm:$0x1]
      %v1052 = vld [vmem:[%s619] sm:$0x1]
      %v1053 = vsel %vm651, %v1050, 0.0
      %1054 = vadd.xlane.f32.xlu0 %v1053
      %v1055 = vpop.xlane.xlu0 %1054
      %v1056 = vmul.f32 %v1055, %v661
      %v1057 = vsub.f32 %v1050, %v1056
      %v1058 = vmul.f32 %v1057, %v1057
      %v1059 = vsel %vm651, %v1058, 0.0
      %1060 = vadd.xlane.f32.xlu0 %v1059
      %v1061 = vpop.xlane.xlu0 %1060
      %v1062 = vmul.f32 %v1061, %v661
      %v1063 = vadd.f32 %v1062, 1e-06
      %v1064 = vrsqrt.pop %v1063
      %v1065 = vmul.f32 %v1064, %v1063
      %v1066 = vmul.f32 %v1065, %v1064
      %v1067 = vmul.f32 0.5, %v1066
      %v1068 = vsub.f32 1.5, %v1067
      %v1069 = vmul.f32 %v1064, %v1068
      %vm1070 = vweird.f32 %v1063
      %vm1071 = vweird.f32 %v1064
      %vm1072 = vmor %vm1070, %vm1071
      %v1073 = vsel %vm1072, %v1064, %v1069
      %v1074 = vmul.f32 %v1057, %v1073
      %v1076 = vperm.slane %v1051, 0
      %v1078 = vmul.f32 %v1074, %v1076
      %v1080 = vperm.slane %v1052, 0
      %v1082 = vadd.f32 %v1078, %v1080
      %v1083 = vld [vmem:[%s624] sm:$0xf]
      %v1084 = vld [vmem:[%s624 + $0x4] sm:$0xf]
      %v1085 = vld [vmem:[%s624 + $0x8] sm:$0xf]
      %v1086 = vld [vmem:[%s624 + $0xc] sm:$0xf]
      %v1087 = vpack.c.bf16 %v1082, %v1082
      %v1088 = vld [vmem:[%s627] sm:$0x1]
      %v1090 = vperm.slane %v1088, 0
      %v1096 = vunpack.c.l.b16 %v1083
      %v1097 = vunpack.c.l.b16 %v1084
      %v1098 = vunpack.c.l.b16 %v1085
      %v1099 = vunpack.c.l.b16 %v1086
      %v1100 = vpack.c.b16 %v1097, %v1096
      %v1101 = vpack.c.b16 %v1099, %v1098
      %v1105 = vsel %vm710, %v1087, 0
      %1107 = vmatpush.bf16.msra.mxu0 0
      %1108 = vmatpush.bf16.msra.mxu0 0
      %1109 = vmatpush.bf16.msra.mxu0 0
      %1110 = vmatpush.bf16.msra.mxu0 0
      %1111 = vmatpush.bf16.msra.mxu0 0
      %1112 = vmatpush.bf16.msra.mxu0 0
      %1113 = vmatpush.bf16.msra.mxu0 %v1101
      %1114 = vmatpush.bf16.msra.mxu0 %v1100
      %1115 = vmatmul.bf16.gmra.mxu0 %v1105
      %v1116 = vpop.f32.mrf.mxu0
      %v1117 = vadd.f32 %v1090, %v1116
      %v1118 = vpop.f32.mrf.mxu0
      %1119 = vdwg.mxu0
      %v1120 = vmul.f32 %v1117, 0.5
      %v1121 = vmul.f32 %v1117, 0.044715
      %v1122 = vmul.f32 %v1121, %v1117
      %v1123 = vmul.f32 %v1122, %v1117
      %v1124 = vadd.f32 %v1117, %v1123
      %v1125 = vmul.f32 %v1124, 0.7978846
      %v1126 = vtanh.pop %v1125
      %v1127 = vadd.f32 %v1126, 1.0
      %v1128 = vmul.f32 %v1120, %v1127
      %v1129 = vld [vmem:[%s632] sm:$0xf]
      %v1130 = vld [vmem:[%s632 + $0x4] sm:$0xf]
      %v1131 = vld [vmem:[%s632 + $0x8] sm:$0xf]
      %v1132 = vld [vmem:[%s632 + $0xc] sm:$0xf]
      %v1133 = vld [vmem:[%s632 + $0x10] sm:$0xf]
      %v1134 = vld [vmem:[%s632 + $0x14] sm:$0xf]
      %v1135 = vld [vmem:[%s632 + $0x18] sm:$0xf]
      %v1136 = vld [vmem:[%s632 + $0x1c] sm:$0xf]
      %v1137 = vld [vmem:[%s632 + $0x20] sm:$0xf]
      %v1138 = vld [vmem:[%s632 + $0x24] sm:$0xf]
      %v1139 = vld [vmem:[%s632 + $0x28] sm:$0xf]
      %v1140 = vld [vmem:[%s632 + $0x2c] sm:$0xf]
      %v1141 = vld [vmem:[%s632 + $0x30] sm:$0xf]
      %v1142 = vld [vmem:[%s632 + $0x34] sm:$0xf]
      %v1143 = vld [vmem:[%s632 + $0x38] sm:$0xf]
      %v1144 = vld [vmem:[%s632 + $0x3c] sm:$0xf]
      %v1145 = vpack.c.bf16 %v1128, %v1128
      %v1146 = vld [vmem:[%s635] sm:$0x1]
      %v1148 = vperm.slane %v1146, 0
      %v1166 = vunpack.c.l.b16 %v1129
      %v1167 = vunpack.c.l.b16 %v1130
      %v1168 = vunpack.c.l.b16 %v1131
      %v1169 = vunpack.c.l.b16 %v1132
      %v1170 = vunpack.c.l.b16 %v1133
      %v1171 = vunpack.c.l.b16 %v1134
      %v1172 = vunpack.c.l.b16 %v1135
      %v1173 = vunpack.c.l.b16 %v1136
      %v1174 = vunpack.c.l.b16 %v1137
      %v1175 = vunpack.c.l.b16 %v1138
      %v1176 = vunpack.c.l.b16 %v1139
      %v1177 = vunpack.c.l.b16 %v1140
      %v1178 = vunpack.c.l.b16 %v1141
      %v1179 = vunpack.c.l.b16 %v1142
      %v1180 = vunpack.c.l.b16 %v1143
      %v1181 = vunpack.c.l.b16 %v1144
      %v1182 = vpack.c.b16 %v1167, %v1166
      %v1183 = vpack.c.b16 %v1169, %v1168
      %v1184 = vpack.c.b16 %v1171, %v1170
      %v1185 = vpack.c.b16 %v1173, %v1172
      %v1186 = vpack.c.b16 %v1175, %v1174
      %v1187 = vpack.c.b16 %v1177, %v1176
      %v1188 = vpack.c.b16 %v1179, %v1178
      %v1189 = vpack.c.b16 %v1181, %v1180
      %1198 = vmatpush.bf16.msra.mxu0 %v1189
      %1199 = vmatpush.bf16.msra.mxu0 %v1188
      %1200 = vmatpush.bf16.msra.mxu0 %v1187
      %1201 = vmatpush.bf16.msra.mxu0 %v1186
      %1202 = vmatpush.bf16.msra.mxu0 %v1185
      %1203 = vmatpush.bf16.msra.mxu0 %v1184
      %1204 = vmatpush.bf16.msra.mxu0 %v1183
      %1205 = vmatpush.bf16.msra.mxu0 %v1182
      %1206 = vmatmul.bf16.gmra.mxu0 %v1145
      %v1207 = vpop.f32.mrf.mxu0
      %v1208 = vadd.f32 %v1148, %v1207
      %v1209 = vpop.f32.mrf.mxu0
      %1210 = vdwg.mxu0
      %v1211 = vadd.f32 %v1050, %v1208
      %1212 = vst.msk [vmem:[%s639] sm:$0x1f] %vm651, %v1211
      %p1213 = scmp.lt.s32.totalorder %s28, 1
      %s1214 = scalar_select %p1213, %s28, 1
      %s1215 = smul.addr %s1214, 8
      %s1216 = scalar_lea.vmem %s13, %s1215
      // Predicated region
      $region77: #{dino_peft_forward.3} parent=71 // pred_check
        %p1217 = pneg %p392
      $region78: #{dino_peft_forward.3} parent=71 // pred_check_branch
        %1219 = sbr.rel (%p1217) target = $region80
      $region79: #{dino_peft_forward.3} parent=71 // pred_region
        _
      $region80: #{dino_peft_forward.3} parent=71 // pred_fallthru
        _
    $region72: #{dino_peft_forward.3} parent=5 // pred_fallthru
      _
    %p1220 = scmp.le.s32.totalorder 2, %s19
    // Predicated region
    $region81: #{dino_peft_forward.3} parent=5 // pred_check
      %p1221 = pneg %p1220
    $region82: #{dino_peft_forward.3} parent=5 // pred_check_branch
      %1223 = sbr.rel (%p1221) target = $region84
    $region83: #{dino_peft_forward.3} parent=5 // pred_region
      %s1224 = ssub.s32 %s19, 2
      // Predicated region
      $region85: #{dino_peft_forward.3} parent=83 // pred_check
        %p1225 = pneg %p398
      $region86: #{dino_peft_forward.3} parent=83 // pred_check_branch
        %1227 = sbr.rel (%p1225) target = $region88
      $region87: #{dino_peft_forward.3} parent=83 // pred_region
        %p1228 = scmp.lt.s32.totalorder %s30, 1
        %s1229 = scalar_select %p1228, %s30, 1
        %s1230 = smul.addr %s1229, 8
        %s1231 = scalar_lea.vmem %s13, %s1230
      $region88: #{dino_peft_forward.3} parent=83 // pred_fallthru
        _
    $region84: #{dino_peft_forward.3} parent=5 // pred_fallthru
      _
  $region6: #{dino_peft_forward.3} parent=0 // loop_footer
    %s23 = sadd.s32 1, %s19
  $region7: #{dino_peft_forward.3} parent=0 // loop_footer_branch
    %18 = sbr.rel target = $region3
  $region8: #{dino_peft_forward.3} parent=0 // loop_exit
    _

</llo_original>
